<compile_context>
chip_gen: v6e
topology: v6e:2x2x1
jax: 0.10.0
libtpu: 0.0.40
codegen_flags: <defaults>
</compile_context>

<pallas_src>
import functools
import math

import jax
import jax.numpy as jnp
from jax.experimental import pallas as pl
from jax.experimental.pallas import tpu as pltpu


# ----------------------------------------------------------------------------
# Fused CBAM kernel (Bt batch elements per grid step)
# ----------------------------------------------------------------------------
def _cbam_kernel(x_ref, w1_ref, b1_ref, w2_ref, b2_ref, wsp_ref, bsp_ref,
                 o_ref, pool_ref, pad_ref, *, H, W, C, K, PAD, BT):
    """Block / scratch shapes:
      x_ref   : (BT, H, W, C)  f32 NHWC activation tile
      w1_ref  : (C, mid)       bottleneck Linear 1 (x @ W form)
      b1_ref  : (1, mid)
      w2_ref  : (mid, C)       bottleneck Linear 2
      b2_ref  : (1, C)
      wsp_ref : (2*K*K,) SMEM  spatial conv weights, [c, ky, kx] row-major
                               (c=0 -> channel-max map, c=1 -> channel-avg map)
      bsp_ref : (1,)     SMEM  spatial conv bias
      o_ref   : (BT, H, W, C)
      pool_ref: VMEM (2*BT, C)            stacked avg/max pools (fused MLP LHS)
      pad_ref : VMEM (2*BT, H+2P, W+2P)   zero-halo 2-D pooled maps (stencil)
    """
    Hp, Wp = H + 2 * PAD, W + 2 * PAD
    x = x_ref[...]                                             # (BT, H, W, C)

    # ------------------------- channel attention -------------------------
    # Spatial pools -> (BT, C); rows [0:BT]=avg, [BT:2BT]=max.
    pool_ref[0:BT, :] = x.sum(axis=1).sum(axis=1) * (1.0 / (H * W))
    pool_ref[BT:2 * BT, :] = x.max(axis=1).max(axis=1)

    # One fused bottleneck MLP over both pool types at once: (2*BT, C).
    h = jnp.dot(pool_ref[...], w1_ref[...],
                preferred_element_type=jnp.float32) + b1_ref[...]
    # ELU (alpha=1); exp clamped so the dead branch never produces inf.
    h = jnp.where(h > 0.0, h, jnp.exp(jnp.minimum(h, 0.0)) - 1.0)
    z = jnp.dot(h, w2_ref[...],
                preferred_element_type=jnp.float32) + b2_ref[...]
    logits = z[0:BT, :] + z[BT:2 * BT, :]                      # (BT, C)
    ch_att = 1.0 / (1.0 + jnp.exp(-logits))                    # sigmoid
    fp = x * ch_att[:, None, None, :]                          # (BT, H, W, C)

    # ------------------------- spatial attention -------------------------
    # Channel pools stay UN-broadcast: tiny (BT, H, W) maps only.
    ch_max = fp.max(axis=3)                                    # (BT, H, W)
    ch_avg = fp.sum(axis=3) * (1.0 / C)                        # (BT, H, W)

    # Zero only the halo border (interior is fully overwritten each step).
    if PAD > 0:
        zrow = jnp.zeros((2 * BT, PAD, Wp), jnp.float32)
        zcol = jnp.zeros((2 * BT, Hp, PAD), jnp.float32)
        pad_ref[:, 0:PAD, :] = zrow
        pad_ref[:, PAD + H:Hp, :] = zrow
        pad_ref[:, :, 0:PAD] = zcol
        pad_ref[:, :, PAD + W:Wp] = zcol
    pad_ref[0:BT, PAD:PAD + H, PAD:PAD + W] = ch_max
    pad_ref[BT:2 * BT, PAD:PAD + H, PAD:PAD + W] = ch_avg

    # K x K conv (2 -> 1 channels) as 2*K*K scalar MACs on the tiny 2-D maps.
    acc = jnp.zeros((BT, H, W), jnp.float32) + bsp_ref[0]
    for c in range(2):
        for ky in range(K):
            for kx in range(K):
                wv = wsp_ref[c * K * K + ky * K + kx]          # SMEM scalar
                acc = acc + wv * pad_ref[c * BT:(c + 1) * BT,
                                         ky:ky + H, kx:kx + W]

    sp_att = 1.0 / (1.0 + jnp.exp(-acc))                       # (BT, H, W)
    # Broadcast the 2-D gate across the lane (channel) axis only here.
    o_ref[...] = (fp * sp_att[:, :, :, None]).astype(o_ref.dtype)


# ----------------------------------------------------------------------------
# Batch-tile selection: biggest per-step tile that is VMEM-safe everywhere,
# divides B, and keeps >= 2 grid steps for v7x's two TensorCores.
# ----------------------------------------------------------------------------
def _pick_bt(B, H, W, C, vmem_budget_bytes=12 << 20):
    bytes_per_batch = H * W * C * 4
    bt = max(1, vmem_budget_bytes // (4 * bytes_per_batch))  # in+out, 2 buffers
    bt = min(bt, B)
    if B >= 2:
        bt = min(bt, (B + 1) // 2)        # keep at least two (parallel) steps
    while B % bt != 0:
        bt -= 1
    return bt


# ----------------------------------------------------------------------------
# Wrapper: NCHW in / NCHW out by default (NHWC passthrough available)
# ----------------------------------------------------------------------------
def cbam_forward(x, p, *, kernel_size=3, data_format="NCHW"):
    K = kernel_size
    PAD = (K - 1) // 2
    mid = p["w1"].shape[1]

    if data_format == "NCHW":
        B, C, H, W = x.shape
        xh = jnp.transpose(x, (0, 2, 3, 1))                    # NHWC
    else:                                                      # already NHWC
        B, H, W, C = x.shape
        xh = x
    if xh.dtype != jnp.float32:
        xh = xh.astype(jnp.float32)

    BT = _pick_bt(B, H, W, C)
    Hp, Wp = H + 2 * PAD, W + 2 * PAD

    # Advisory cost hint for XLA scheduling around the custom call.
    flops = B * (6 * H * W * C + 2 * (2 * C * mid + 2 * mid * C)
                 + 2 * 2 * K * K * H * W)
    transc = B * (2 * mid + C + H * W)
    bytes_accessed = (2 * B * H * W * C
                      + C * mid + mid + mid * C + C + 2 * K * K + 1) * 4

    kern = functools.partial(_cbam_kernel, H=H, W=W, C=C, K=K, PAD=PAD, BT=BT)
    out = pl.pallas_call(
        kern,
        out_shape=jax.ShapeDtypeStruct((B, H, W, C), jnp.float32),
        grid_spec=pltpu.PrefetchScalarGridSpec(
            num_scalar_prefetch=0,
            grid=(B // BT,),
            in_specs=[
                pl.BlockSpec((BT, H, W, C), lambda b: (b, 0, 0, 0)),
                pl.BlockSpec((C, mid), lambda b: (0, 0)),
                pl.BlockSpec((1, mid), lambda b: (0, 0)),
                pl.BlockSpec((mid, C), lambda b: (0, 0)),
                pl.BlockSpec((1, C), lambda b: (0, 0)),
                pl.BlockSpec(memory_space=pltpu.MemorySpace.SMEM),
                pl.BlockSpec(memory_space=pltpu.MemorySpace.SMEM),
            ],
            out_specs=pl.BlockSpec((BT, H, W, C), lambda b: (b, 0, 0, 0)),
            scratch_shapes=[
                pltpu.VMEM((2 * BT, C), jnp.float32),          # stacked pools
                pltpu.VMEM((2 * BT, Hp, Wp), jnp.float32),     # zero-halo maps
            ],
        ),
        compiler_params=pltpu.CompilerParams(
            dimension_semantics=("parallel",)),
        cost_estimate=pl.CostEstimate(flops=flops, transcendentals=transc,
                                      bytes_accessed=bytes_accessed),
    )(xh, p["w1"], p["b1"], p["w2"], p["b2"], p["w_sp"], p["b_sp"])

    if data_format == "NCHW":
        out = jnp.transpose(out, (0, 3, 1, 2))                 # back to NCHW
    return out


# ----------------------------------------------------------------------------
# Deterministic parameter init (PyTorch-default-like uniform fan-in scaling)
# ----------------------------------------------------------------------------
def init_cbam(key, n_channels, reduction_ratio=4, kernel_size=3):
    mid = int(n_channels / float(reduction_ratio))
    k1, k2, k3, k4, k5, k6 = jax.random.split(key, 6)
    lim1 = 1.0 / math.sqrt(n_channels)
    lim2 = 1.0 / math.sqrt(mid)
    limc = 1.0 / math.sqrt(2 * kernel_size * kernel_size)
    return {
        "w1": jax.random.uniform(k1, (n_channels, mid), jnp.float32, -lim1, lim1),
        "b1": jax.random.uniform(k2, (1, mid), jnp.float32, -lim1, lim1),
        "w2": jax.random.uniform(k3, (mid, n_channels), jnp.float32, -lim2, lim2),
        "b2": jax.random.uniform(k4, (1, n_channels), jnp.float32, -lim2, lim2),
        # flattened Conv2d(2, 1, K, K) weight: [c, ky, kx] row-major
        "w_sp": jax.random.uniform(k5, (2 * kernel_size * kernel_size,),
                                   jnp.float32, -limc, limc),
        "b_sp": jax.random.uniform(k6, (1,), jnp.float32, -limc, limc),
    }


# ----------------------------------------------------------------------------
# Pure-JAX reference (mirrors the PyTorch CBAM forward, NCHW)
# ----------------------------------------------------------------------------
def cbam_reference(x, p, *, kernel_size=3):
    B, C, H, W = x.shape
    K = kernel_size
    PAD = (K - 1) // 2
    avg = x.mean(axis=(2, 3))                                  # (B, C)
    mx = x.max(axis=(2, 3))                                    # (B, C)

    def bottleneck(v):
        h = v @ p["w1"] + p["b1"]
        h = jax.nn.elu(h)
        return h @ p["w2"] + p["b2"]

    att = jax.nn.sigmoid(bottleneck(avg) + bottleneck(mx))     # (B, C)
    fp = x * att[:, :, None, None]
    ch_max = fp.max(axis=1, keepdims=True)
    ch_avg = fp.mean(axis=1, keepdims=True)
    pool = jnp.concatenate([ch_max, ch_avg], axis=1)           # (B, 2, H, W)
    wconv = p["w_sp"].reshape(1, 2, K, K)
    conv = jax.lax.conv_general_dilated(
        pool, wconv, window_strides=(1, 1),
        padding=((PAD, PAD), (PAD, PAD)),
        dimension_numbers=("NCHW", "OIHW", "NCHW"))
    conv = conv + p["b_sp"].reshape(1, 1, 1, 1)
    spat = jax.nn.sigmoid(conv)                                # (B, 1, H, W)
    return fp * spat


if __name__ == "__main__":
    key = jax.random.PRNGKey(0)
    kx, kp = jax.random.split(key)

    # channels=128 keeps the lane axis dense; reduction_ratio=4 -> middle=32.
    # B=4 -> batch tile Bt=2, grid of 2 parallel steps (keeps both v7x cores fed).
    B, C, H, W = 4, 128, 16, 16
    x = jax.random.normal(kx, (B, C, H, W), jnp.float32)
    params = init_cbam(kp, C, reduction_ratio=4, kernel_size=3)

    fwd = jax.jit(functools.partial(cbam_forward, kernel_size=3))
    out = jax.block_until_ready(fwd(x, params))

    assert out.shape == (B, C, H, W), out.shape
    assert bool(jnp.all(jnp.isfinite(out)))

    ref = cbam_reference(x, params, kernel_size=3)
    err = float(jnp.max(jnp.abs(out - ref)))
    assert err < 5e-3, f"max abs error vs reference: {err}"

    print("KERNEL_OK")
</pallas_src>

<mosaic_0001>
module attributes {stable_mosaic.version = 11 : i64} {
  func.func @_cbam_kernel(%arg0: i32, %arg1: memref<2x16x16x128xf32, #tpu.memory_space<vmem>>, %arg2: memref<128x32xf32, #tpu.memory_space<vmem>>, %arg3: memref<1x32xf32, #tpu.memory_space<vmem>>, %arg4: memref<32x128xf32, #tpu.memory_space<vmem>>, %arg5: memref<1x128xf32, #tpu.memory_space<vmem>>, %arg6: memref<18xf32, #tpu.memory_space<smem>>, %arg7: memref<1xf32, #tpu.memory_space<smem>>, %arg8: memref<2x16x16x128xf32, #tpu.memory_space<vmem>>, %arg9: memref<4x128xf32, #tpu.memory_space<vmem>>, %arg10: memref<4x18x18xf32, #tpu.memory_space<vmem>>) attributes {dimension_semantics = [#tpu.dimension_semantics<parallel>], iteration_bounds = array<i64: 2>, scalar_prefetch = 0 : i64, scratch_operands = 2 : i64, tpu.core_type = #tpu.core_type<tc>, window_params = [{transform_indices = @transform_0, window_bounds = array<i64: 2, 16, 16, 128>}, {pipeline_mode = #tpu.pipeline_mode<synchronous>, transform_indices = @transform_1, window_bounds = array<i64: 128, 32>}, {pipeline_mode = #tpu.pipeline_mode<synchronous>, transform_indices = @transform_2, window_bounds = array<i64: 1, 32>}, {pipeline_mode = #tpu.pipeline_mode<synchronous>, transform_indices = @transform_3, window_bounds = array<i64: 32, 128>}, {pipeline_mode = #tpu.pipeline_mode<synchronous>, transform_indices = @transform_4, window_bounds = array<i64: 1, 128>}, {transform_indices = @transform_5, window_bounds = array<i64: 18>}, {transform_indices = @transform_6, window_bounds = array<i64: 1>}, {transform_indices = @transform_7, window_bounds = array<i64: 2, 16, 16, 128>}]} {
    %c0 = arith.constant 0 : index
    %c0_0 = arith.constant 0 : index
    %c0_1 = arith.constant 0 : index
    %c0_2 = arith.constant 0 : index
    %0 = vector.load %arg1[%c0, %c0_0, %c0_1, %c0_2] : memref<2x16x16x128xf32, #tpu.memory_space<vmem>>, vector<2x16x16x128xf32>
    %cst = arith.constant dense<0.000000e+00> : vector<2x16x128xf32>
    %1 = vector.multi_reduction <add>, %0, %cst [1] : vector<2x16x16x128xf32> to vector<2x16x128xf32>
    %cst_3 = arith.constant dense<0.000000e+00> : vector<2x128xf32>
    %2 = vector.multi_reduction <add>, %1, %cst_3 [1] : vector<2x16x128xf32> to vector<2x128xf32>
    %cst_4 = arith.constant 3.906250e-03 : f32
    %3 = vector.broadcast %cst_4 : f32 to vector<2x128xf32>
    %4 = arith.mulf %2, %3 : vector<2x128xf32>
    %c0_5 = arith.constant 0 : index
    %c0_6 = arith.constant 0 : index
    %5 = vector.load %arg9[%c0_5, %c0_6] : memref<4x128xf32, #tpu.memory_space<vmem>>, vector<2x128xf32>
    tpu.vector_store %arg9[%c0_5, %c0_6], %4 {strides = array<i32>} : memref<4x128xf32, #tpu.memory_space<vmem>>, vector<2x128xf32>,
    %cst_7 = arith.constant dense<0xFF800000> : vector<2x16x128xf32>
    %6 = vector.multi_reduction <maximumf>, %0, %cst_7 [1] : vector<2x16x16x128xf32> to vector<2x16x128xf32>
    %cst_8 = arith.constant dense<0xFF800000> : vector<2x128xf32>
    %7 = vector.multi_reduction <maximumf>, %6, %cst_8 [1] : vector<2x16x128xf32> to vector<2x128xf32>
    %c2 = arith.constant 2 : index
    %c0_9 = arith.constant 0 : index
    %8 = vector.load %arg9[%c2, %c0_9] : memref<4x128xf32, #tpu.memory_space<vmem>>, vector<2x128xf32>
    tpu.vector_store %arg9[%c2, %c0_9], %7 {strides = array<i32>} : memref<4x128xf32, #tpu.memory_space<vmem>>, vector<2x128xf32>,
    %c0_10 = arith.constant 0 : index
    %c0_11 = arith.constant 0 : index
    %9 = vector.load %arg9[%c0_10, %c0_11] : memref<4x128xf32, #tpu.memory_space<vmem>>, vector<4x128xf32>
    %c0_12 = arith.constant 0 : index
    %c0_13 = arith.constant 0 : index
    %10 = vector.load %arg2[%c0_12, %c0_13] : memref<128x32xf32, #tpu.memory_space<vmem>>, vector<128x32xf32>
    %cst_14 = arith.constant dense<0.000000e+00> : vector<4x32xf32>
    %11 = tpu.matmul %9, %10, %cst_14 {dimension_numbers = #tpu.dot_dimension_numbers<[1], [0], [0], [1], [0, 0, 1, 1], [], []>} : vector<4x128xf32>, vector<128x32xf32>, vector<4x32xf32> -> vector<4x32xf32>
    %c0_15 = arith.constant 0 : index
    %c0_16 = arith.constant 0 : index
    %12 = vector.load %arg3[%c0_15, %c0_16] : memref<1x32xf32, #tpu.memory_space<vmem>>, vector<1x32xf32>
    %13 = vector.broadcast %12 : vector<1x32xf32> to vector<4x32xf32>
    %14 = arith.addf %11, %13 : vector<4x32xf32>
    %cst_17 = arith.constant 0.000000e+00 : f32
    %15 = vector.broadcast %cst_17 : f32 to vector<4x32xf32>
    %16 = arith.cmpf ogt, %14, %15 : vector<4x32xf32>
    %cst_18 = arith.constant 0.000000e+00 : f32
    %17 = vector.broadcast %cst_18 : f32 to vector<4x32xf32>
    %18 = arith.minimumf %14, %17 : vector<4x32xf32>
    %19 = math.exp %18 : vector<4x32xf32>
    %cst_19 = arith.constant 1.000000e+00 : f32
    %20 = vector.broadcast %cst_19 : f32 to vector<4x32xf32>
    %21 = arith.subf %19, %20 : vector<4x32xf32>
    %22 = arith.select %16, %14, %21 : vector<4x32xi1>, vector<4x32xf32>
    %c0_20 = arith.constant 0 : index
    %c0_21 = arith.constant 0 : index
    %23 = vector.load %arg4[%c0_20, %c0_21] : memref<32x128xf32, #tpu.memory_space<vmem>>, vector<32x128xf32>
    %cst_22 = arith.constant dense<0.000000e+00> : vector<4x128xf32>
    %24 = tpu.matmul %22, %23, %cst_22 {dimension_numbers = #tpu.dot_dimension_numbers<[1], [0], [0], [1], [0, 0, 1, 1], [], []>} : vector<4x32xf32>, vector<32x128xf32>, vector<4x128xf32> -> vector<4x128xf32>
    %c0_23 = arith.constant 0 : index
    %c0_24 = arith.constant 0 : index
    %25 = vector.load %arg5[%c0_23, %c0_24] : memref<1x128xf32, #tpu.memory_space<vmem>>, vector<1x128xf32>
    %26 = vector.broadcast %25 : vector<1x128xf32> to vector<4x128xf32>
    %27 = arith.addf %24, %26 : vector<4x128xf32>
    %28 = vector.extract_strided_slice %27 {offsets = [0, 0], sizes = [2, 128], strides = [1, 1]} : vector<4x128xf32> to vector<2x128xf32>
    %29 = vector.extract_strided_slice %27 {offsets = [2, 0], sizes = [2, 128], strides = [1, 1]} : vector<4x128xf32> to vector<2x128xf32>
    %30 = arith.addf %28, %29 : vector<2x128xf32>
    %cst_25 = arith.constant 0.000000e+00 : f32
    %31 = vector.broadcast %cst_25 : f32 to vector<2x128xf32>
    %32 = arith.subf %31, %30 : vector<2x128xf32>
    %33 = math.exp %32 : vector<2x128xf32>
    %cst_26 = arith.constant 1.000000e+00 : f32
    %34 = vector.broadcast %cst_26 : f32 to vector<2x128xf32>
    %35 = arith.addf %34, %33 : vector<2x128xf32>
    %cst_27 = arith.constant 1.000000e+00 : f32
    %36 = vector.broadcast %cst_27 : f32 to vector<2x128xf32>
    %37 = arith.divf %36, %35 : vector<2x128xf32>
    %38 = vector.shape_cast %37 : vector<2x128xf32> to vector<2x1x1x128xf32>
    %39 = vector.broadcast %38 : vector<2x1x1x128xf32> to vector<2x16x16x128xf32>
    %40 = arith.mulf %0, %39 : vector<2x16x16x128xf32>
    %cst_28 = arith.constant dense<0xFF800000> : vector<2x16x16xf32>
    %41 = vector.multi_reduction <maximumf>, %40, %cst_28 [3] : vector<2x16x16x128xf32> to vector<2x16x16xf32>
    %cst_29 = arith.constant dense<0.000000e+00> : vector<2x16x16xf32>
    %42 = vector.multi_reduction <add>, %40, %cst_29 [3] : vector<2x16x16x128xf32> to vector<2x16x16xf32>
    %cst_30 = arith.constant 7.812500e-03 : f32
    %43 = vector.broadcast %cst_30 : f32 to vector<2x16x16xf32>
    %44 = arith.mulf %42, %43 : vector<2x16x16xf32>
    %cst_31 = arith.constant 0.000000e+00 : f32
    %45 = vector.broadcast %cst_31 : f32 to vector<4x1x18xf32>
    %cst_32 = arith.constant 0.000000e+00 : f32
    %46 = vector.broadcast %cst_32 : f32 to vector<4x18x1xf32>
    %c0_33 = arith.constant 0 : index
    %c0_34 = arith.constant 0 : index
    %c0_35 = arith.constant 0 : index
    %47 = vector.load %arg10[%c0_33, %c0_34, %c0_35] : memref<4x18x18xf32, #tpu.memory_space<vmem>>, vector<4x1x18xf32>
    tpu.vector_store %arg10[%c0_33, %c0_34, %c0_35], %45 {strides = array<i32>} : memref<4x18x18xf32, #tpu.memory_space<vmem>>, vector<4x1x18xf32>,
    %c0_36 = arith.constant 0 : index
    %c17 = arith.constant 17 : index
    %c0_37 = arith.constant 0 : index
    %48 = vector.load %arg10[%c0_36, %c17, %c0_37] : memref<4x18x18xf32, #tpu.memory_space<vmem>>, vector<4x1x18xf32>
    tpu.vector_store %arg10[%c0_36, %c17, %c0_37], %45 {strides = array<i32>} : memref<4x18x18xf32, #tpu.memory_space<vmem>>, vector<4x1x18xf32>,
    %c0_38 = arith.constant 0 : index
    %c0_39 = arith.constant 0 : index
    %c0_40 = arith.constant 0 : index
    %49 = vector.load %arg10[%c0_38, %c0_39, %c0_40] : memref<4x18x18xf32, #tpu.memory_space<vmem>>, vector<4x18x1xf32>
    tpu.vector_store %arg10[%c0_38, %c0_39, %c0_40], %46 {strides = array<i32>} : memref<4x18x18xf32, #tpu.memory_space<vmem>>, vector<4x18x1xf32>,
    %c0_41 = arith.constant 0 : index
    %c0_42 = arith.constant 0 : index
    %c17_43 = arith.constant 17 : index
    %50 = vector.load %arg10[%c0_41, %c0_42, %c17_43] : memref<4x18x18xf32, #tpu.memory_space<vmem>>, vector<4x18x1xf32>
    tpu.vector_store %arg10[%c0_41, %c0_42, %c17_43], %46 {strides = array<i32>} : memref<4x18x18xf32, #tpu.memory_space<vmem>>, vector<4x18x1xf32>,
    %c0_44 = arith.constant 0 : index
    %c1 = arith.constant 1 : index
    %c1_45 = arith.constant 1 : index
    %51 = vector.load %arg10[%c0_44, %c1, %c1_45] : memref<4x18x18xf32, #tpu.memory_space<vmem>>, vector<2x16x16xf32>
    tpu.vector_store %arg10[%c0_44, %c1, %c1_45], %41 {strides = array<i32>} : memref<4x18x18xf32, #tpu.memory_space<vmem>>, vector<2x16x16xf32>,
    %c2_46 = arith.constant 2 : index
    %c1_47 = arith.constant 1 : index
    %c1_48 = arith.constant 1 : index
    %52 = vector.load %arg10[%c2_46, %c1_47, %c1_48] : memref<4x18x18xf32, #tpu.memory_space<vmem>>, vector<2x16x16xf32>
    tpu.vector_store %arg10[%c2_46, %c1_47, %c1_48], %44 {strides = array<i32>} : memref<4x18x18xf32, #tpu.memory_space<vmem>>, vector<2x16x16xf32>,
    %cst_49 = arith.constant 0.000000e+00 : f32
    %53 = vector.broadcast %cst_49 : f32 to vector<2x16x16xf32>
    %c0_50 = arith.constant 0 : index
    %54 = memref.load %arg7[%c0_50] : memref<1xf32, #tpu.memory_space<smem>>
    %55 = vector.broadcast %54 : f32 to vector<2x16x16xf32>
    %56 = arith.addf %53, %55 : vector<2x16x16xf32>
    %c0_51 = arith.constant 0 : index
    %57 = memref.load %arg6[%c0_51] : memref<18xf32, #tpu.memory_space<smem>>
    %c0_52 = arith.constant 0 : index
    %c0_53 = arith.constant 0 : index
    %c0_54 = arith.constant 0 : index
    %58 = vector.load %arg10[%c0_52, %c0_53, %c0_54] : memref<4x18x18xf32, #tpu.memory_space<vmem>>, vector<2x16x16xf32>
    %59 = vector.broadcast %57 : f32 to vector<2x16x16xf32>
    %60 = arith.mulf %59, %58 : vector<2x16x16xf32>
    %61 = arith.addf %56, %60 : vector<2x16x16xf32>
    %c1_55 = arith.constant 1 : index
    %62 = memref.load %arg6[%c1_55] : memref<18xf32, #tpu.memory_space<smem>>
    %c0_56 = arith.constant 0 : index
    %c0_57 = arith.constant 0 : index
    %c1_58 = arith.constant 1 : index
    %63 = vector.load %arg10[%c0_56, %c0_57, %c1_58] : memref<4x18x18xf32, #tpu.memory_space<vmem>>, vector<2x16x16xf32>
    %64 = vector.broadcast %62 : f32 to vector<2x16x16xf32>
    %65 = arith.mulf %64, %63 : vector<2x16x16xf32>
    %66 = arith.addf %61, %65 : vector<2x16x16xf32>
    %c2_59 = arith.constant 2 : index
    %67 = memref.load %arg6[%c2_59] : memref<18xf32, #tpu.memory_space<smem>>
    %c0_60 = arith.constant 0 : index
    %c0_61 = arith.constant 0 : index
    %c2_62 = arith.constant 2 : index
    %68 = vector.load %arg10[%c0_60, %c0_61, %c2_62] : memref<4x18x18xf32, #tpu.memory_space<vmem>>, vector<2x16x16xf32>
    %69 = vector.broadcast %67 : f32 to vector<2x16x16xf32>
    %70 = arith.mulf %69, %68 : vector<2x16x16xf32>
    %71 = arith.addf %66, %70 : vector<2x16x16xf32>
    %c3 = arith.constant 3 : index
    %72 = memref.load %arg6[%c3] : memref<18xf32, #tpu.memory_space<smem>>
    %c0_63 = arith.constant 0 : index
    %c1_64 = arith.constant 1 : index
    %c0_65 = arith.constant 0 : index
    %73 = vector.load %arg10[%c0_63, %c1_64, %c0_65] : memref<4x18x18xf32, #tpu.memory_space<vmem>>, vector<2x16x16xf32>
    %74 = vector.broadcast %72 : f32 to vector<2x16x16xf32>
    %75 = arith.mulf %74, %73 : vector<2x16x16xf32>
    %76 = arith.addf %71, %75 : vector<2x16x16xf32>
    %c4 = arith.constant 4 : index
    %77 = memref.load %arg6[%c4] : memref<18xf32, #tpu.memory_space<smem>>
    %c0_66 = arith.constant 0 : index
    %c1_67 = arith.constant 1 : index
    %c1_68 = arith.constant 1 : index
    %78 = vector.load %arg10[%c0_66, %c1_67, %c1_68] : memref<4x18x18xf32, #tpu.memory_space<vmem>>, vector<2x16x16xf32>
    %79 = vector.broadcast %77 : f32 to vector<2x16x16xf32>
    %80 = arith.mulf %79, %78 : vector<2x16x16xf32>
    %81 = arith.addf %76, %80 : vector<2x16x16xf32>
    %c5 = arith.constant 5 : index
    %82 = memref.load %arg6[%c5] : memref<18xf32, #tpu.memory_space<smem>>
    %c0_69 = arith.constant 0 : index
    %c1_70 = arith.constant 1 : index
    %c2_71 = arith.constant 2 : index
    %83 = vector.load %arg10[%c0_69, %c1_70, %c2_71] : memref<4x18x18xf32, #tpu.memory_space<vmem>>, vector<2x16x16xf32>
    %84 = vector.broadcast %82 : f32 to vector<2x16x16xf32>
    %85 = arith.mulf %84, %83 : vector<2x16x16xf32>
    %86 = arith.addf %81, %85 : vector<2x16x16xf32>
    %c6 = arith.constant 6 : index
    %87 = memref.load %arg6[%c6] : memref<18xf32, #tpu.memory_space<smem>>
    %c0_72 = arith.constant 0 : index
    %c2_73 = arith.constant 2 : index
    %c0_74 = arith.constant 0 : index
    %88 = vector.load %arg10[%c0_72, %c2_73, %c0_74] : memref<4x18x18xf32, #tpu.memory_space<vmem>>, vector<2x16x16xf32>
    %89 = vector.broadcast %87 : f32 to vector<2x16x16xf32>
    %90 = arith.mulf %89, %88 : vector<2x16x16xf32>
    %91 = arith.addf %86, %90 : vector<2x16x16xf32>
    %c7 = arith.constant 7 : index
    %92 = memref.load %arg6[%c7] : memref<18xf32, #tpu.memory_space<smem>>
    %c0_75 = arith.constant 0 : index
    %c2_76 = arith.constant 2 : index
    %c1_77 = arith.constant 1 : index
    %93 = vector.load %arg10[%c0_75, %c2_76, %c1_77] : memref<4x18x18xf32, #tpu.memory_space<vmem>>, vector<2x16x16xf32>
    %94 = vector.broadcast %92 : f32 to vector<2x16x16xf32>
    %95 = arith.mulf %94, %93 : vector<2x16x16xf32>
    %96 = arith.addf %91, %95 : vector<2x16x16xf32>
    %c8 = arith.constant 8 : index
    %97 = memref.load %arg6[%c8] : memref<18xf32, #tpu.memory_space<smem>>
    %c0_78 = arith.constant 0 : index
    %c2_79 = arith.constant 2 : index
    %c2_80 = arith.constant 2 : index
    %98 = vector.load %arg10[%c0_78, %c2_79, %c2_80] : memref<4x18x18xf32, #tpu.memory_space<vmem>>, vector<2x16x16xf32>
    %99 = vector.broadcast %97 : f32 to vector<2x16x16xf32>
    %100 = arith.mulf %99, %98 : vector<2x16x16xf32>
    %101 = arith.addf %96, %100 : vector<2x16x16xf32>
    %c9 = arith.constant 9 : index
    %102 = memref.load %arg6[%c9] : memref<18xf32, #tpu.memory_space<smem>>
    %c2_81 = arith.constant 2 : index
    %c0_82 = arith.constant 0 : index
    %c0_83 = arith.constant 0 : index
    %103 = vector.load %arg10[%c2_81, %c0_82, %c0_83] : memref<4x18x18xf32, #tpu.memory_space<vmem>>, vector<2x16x16xf32>
    %104 = vector.broadcast %102 : f32 to vector<2x16x16xf32>
    %105 = arith.mulf %104, %103 : vector<2x16x16xf32>
    %106 = arith.addf %101, %105 : vector<2x16x16xf32>
    %c10 = arith.constant 10 : index
    %107 = memref.load %arg6[%c10] : memref<18xf32, #tpu.memory_space<smem>>
    %c2_84 = arith.constant 2 : index
    %c0_85 = arith.constant 0 : index
    %c1_86 = arith.constant 1 : index
    %108 = vector.load %arg10[%c2_84, %c0_85, %c1_86] : memref<4x18x18xf32, #tpu.memory_space<vmem>>, vector<2x16x16xf32>
    %109 = vector.broadcast %107 : f32 to vector<2x16x16xf32>
    %110 = arith.mulf %109, %108 : vector<2x16x16xf32>
    %111 = arith.addf %106, %110 : vector<2x16x16xf32>
    %c11 = arith.constant 11 : index
    %112 = memref.load %arg6[%c11] : memref<18xf32, #tpu.memory_space<smem>>
    %c2_87 = arith.constant 2 : index
    %c0_88 = arith.constant 0 : index
    %c2_89 = arith.constant 2 : index
    %113 = vector.load %arg10[%c2_87, %c0_88, %c2_89] : memref<4x18x18xf32, #tpu.memory_space<vmem>>, vector<2x16x16xf32>
    %114 = vector.broadcast %112 : f32 to vector<2x16x16xf32>
    %115 = arith.mulf %114, %113 : vector<2x16x16xf32>
    %116 = arith.addf %111, %115 : vector<2x16x16xf32>
    %c12 = arith.constant 12 : index
    %117 = memref.load %arg6[%c12] : memref<18xf32, #tpu.memory_space<smem>>
    %c2_90 = arith.constant 2 : index
    %c1_91 = arith.constant 1 : index
    %c0_92 = arith.constant 0 : index
    %118 = vector.load %arg10[%c2_90, %c1_91, %c0_92] : memref<4x18x18xf32, #tpu.memory_space<vmem>>, vector<2x16x16xf32>
    %119 = vector.broadcast %117 : f32 to vector<2x16x16xf32>
    %120 = arith.mulf %119, %118 : vector<2x16x16xf32>
    %121 = arith.addf %116, %120 : vector<2x16x16xf32>
    %c13 = arith.constant 13 : index
    %122 = memref.load %arg6[%c13] : memref<18xf32, #tpu.memory_space<smem>>
    %c2_93 = arith.constant 2 : index
    %c1_94 = arith.constant 1 : index
    %c1_95 = arith.constant 1 : index
    %123 = vector.load %arg10[%c2_93, %c1_94, %c1_95] : memref<4x18x18xf32, #tpu.memory_space<vmem>>, vector<2x16x16xf32>
    %124 = vector.broadcast %122 : f32 to vector<2x16x16xf32>
    %125 = arith.mulf %124, %123 : vector<2x16x16xf32>
    %126 = arith.addf %121, %125 : vector<2x16x16xf32>
    %c14 = arith.constant 14 : index
    %127 = memref.load %arg6[%c14] : memref<18xf32, #tpu.memory_space<smem>>
    %c2_96 = arith.constant 2 : index
    %c1_97 = arith.constant 1 : index
    %c2_98 = arith.constant 2 : index
    %128 = vector.load %arg10[%c2_96, %c1_97, %c2_98] : memref<4x18x18xf32, #tpu.memory_space<vmem>>, vector<2x16x16xf32>
    %129 = vector.broadcast %127 : f32 to vector<2x16x16xf32>
    %130 = arith.mulf %129, %128 : vector<2x16x16xf32>
    %131 = arith.addf %126, %130 : vector<2x16x16xf32>
    %c15 = arith.constant 15 : index
    %132 = memref.load %arg6[%c15] : memref<18xf32, #tpu.memory_space<smem>>
    %c2_99 = arith.constant 2 : index
    %c2_100 = arith.constant 2 : index
    %c0_101 = arith.constant 0 : index
    %133 = vector.load %arg10[%c2_99, %c2_100, %c0_101] : memref<4x18x18xf32, #tpu.memory_space<vmem>>, vector<2x16x16xf32>
    %134 = vector.broadcast %132 : f32 to vector<2x16x16xf32>
    %135 = arith.mulf %134, %133 : vector<2x16x16xf32>
    %136 = arith.addf %131, %135 : vector<2x16x16xf32>
    %c16 = arith.constant 16 : index
    %137 = memref.load %arg6[%c16] : memref<18xf32, #tpu.memory_space<smem>>
    %c2_102 = arith.constant 2 : index
    %c2_103 = arith.constant 2 : index
    %c1_104 = arith.constant 1 : index
    %138 = vector.load %arg10[%c2_102, %c2_103, %c1_104] : memref<4x18x18xf32, #tpu.memory_space<vmem>>, vector<2x16x16xf32>
    %139 = vector.broadcast %137 : f32 to vector<2x16x16xf32>
    %140 = arith.mulf %139, %138 : vector<2x16x16xf32>
    %141 = arith.addf %136, %140 : vector<2x16x16xf32>
    %c17_105 = arith.constant 17 : index
    %142 = memref.load %arg6[%c17_105] : memref<18xf32, #tpu.memory_space<smem>>
    %c2_106 = arith.constant 2 : index
    %c2_107 = arith.constant 2 : index
    %c2_108 = arith.constant 2 : index
    %143 = vector.load %arg10[%c2_106, %c2_107, %c2_108] : memref<4x18x18xf32, #tpu.memory_space<vmem>>, vector<2x16x16xf32>
    %144 = vector.broadcast %142 : f32 to vector<2x16x16xf32>
    %145 = arith.mulf %144, %143 : vector<2x16x16xf32>
    %146 = arith.addf %141, %145 : vector<2x16x16xf32>
    %cst_109 = arith.constant 0.000000e+00 : f32
    %147 = vector.broadcast %cst_109 : f32 to vector<2x16x16xf32>
    %148 = arith.subf %147, %146 : vector<2x16x16xf32>
    %149 = math.exp %148 : vector<2x16x16xf32>
    %cst_110 = arith.constant 1.000000e+00 : f32
    %150 = vector.broadcast %cst_110 : f32 to vector<2x16x16xf32>
    %151 = arith.addf %150, %149 : vector<2x16x16xf32>
    %cst_111 = arith.constant 1.000000e+00 : f32
    %152 = vector.broadcast %cst_111 : f32 to vector<2x16x16xf32>
    %153 = arith.divf %152, %151 : vector<2x16x16xf32>
    %154 = vector.shape_cast %153 : vector<2x16x16xf32> to vector<2x16x16x1xf32>
    %155 = vector.broadcast %154 : vector<2x16x16x1xf32> to vector<2x16x16x128xf32>
    %156 = arith.mulf %40, %155 : vector<2x16x16x128xf32>
    %c0_112 = arith.constant 0 : index
    %c0_113 = arith.constant 0 : index
    %c0_114 = arith.constant 0 : index
    %c0_115 = arith.constant 0 : index
    %157 = vector.load %arg8[%c0_112, %c0_113, %c0_114, %c0_115] : memref<2x16x16x128xf32, #tpu.memory_space<vmem>>, vector<2x16x16x128xf32>
    tpu.vector_store %arg8[%c0_112, %c0_113, %c0_114, %c0_115], %156 {strides = array<i32>} : memref<2x16x16x128xf32, #tpu.memory_space<vmem>>, vector<2x16x16x128xf32>,
    return
  }
  func.func @transform_0(%arg0: i32) -> (i32, i32, i32, i32) {
    %c0_i32 = arith.constant 0 : i32
    %c0_i32_0 = arith.constant 0 : i32
    %c0_i32_1 = arith.constant 0 : i32
    %c0_i32_2 = arith.constant 0 : i32
    return %arg0, %c0_i32, %c0_i32_0, %c0_i32_1 : i32, i32, i32, i32
  }
  func.func @transform_1(%arg0: i32) -> (i32, i32) {
    %c0_i32 = arith.constant 0 : i32
    %c0_i32_0 = arith.constant 0 : i32
    %c0_i32_1 = arith.constant 0 : i32
    return %c0_i32, %c0_i32_0 : i32, i32
  }
  func.func @transform_2(%arg0: i32) -> (i32, i32) {
    %c0_i32 = arith.constant 0 : i32
    %c0_i32_0 = arith.constant 0 : i32
    %c0_i32_1 = arith.constant 0 : i32
    return %c0_i32, %c0_i32_0 : i32, i32
  }
  func.func @transform_3(%arg0: i32) -> (i32, i32) {
    %c0_i32 = arith.constant 0 : i32
    %c0_i32_0 = arith.constant 0 : i32
    %c0_i32_1 = arith.constant 0 : i32
    return %c0_i32, %c0_i32_0 : i32, i32
  }
  func.func @transform_4(%arg0: i32) -> (i32, i32) {
    %c0_i32 = arith.constant 0 : i32
    %c0_i32_0 = arith.constant 0 : i32
    %c0_i32_1 = arith.constant 0 : i32
    return %c0_i32, %c0_i32_0 : i32, i32
  }
  func.func @transform_5(%arg0: i32) -> i32 {
    %c0_i32 = arith.constant 0 : i32
    %c0_i32_0 = arith.constant 0 : i32
    return %c0_i32 : i32
  }
  func.func @transform_6(%arg0: i32) -> i32 {
    %c0_i32 = arith.constant 0 : i32
    %c0_i32_0 = arith.constant 0 : i32
    return %c0_i32 : i32
  }
  func.func @transform_7(%arg0: i32) -> (i32, i32, i32, i32) {
    %c0_i32 = arith.constant 0 : i32
    %c0_i32_0 = arith.constant 0 : i32
    %c0_i32_1 = arith.constant 0 : i32
    %c0_i32_2 = arith.constant 0 : i32
    return %arg0, %c0_i32, %c0_i32_0, %c0_i32_1 : i32, i32, i32, i32
  }
}

</mosaic_0001>

<llo_original>
// kernel: cbam_forward.1
$region0: #{cbam_forward.1}
  #allocation0 [shape = 'u32[]', space=smem, size = 0x4, offset = 0x4, fixed_abs, tag = 'smem constant byte address 0x4 - core index']
  #allocation1 [shape = 'u32[144,128]{1,0:T(1,128)}', space=vmem, size = 0x12000, scoped, tag = 'internal scratch']
  #allocation2 [shape = 'f32[4,128]{1,0:T(4,128)}', space=vmem, size = 0x800, scoped, tag = 'scratch operand']
  #allocation3 [shape = 'f32[4,18,18]{2,1,0:T(8,128)}', space=vmem, size = 0xc000, scoped, tag = 'scratch operand']
  #allocation4 [shape = 'f32[1]{0:T(128)S(6)}', space=smem, size = 0x200, scoped, tag = 'scoped memory for cbam_forward.1']
  %s0 = inlined_call_operand.hbm [shape: f32[4,16,16,128], index: 0, kind: input, shape index: {}]
  %s1 = inlined_call_operand.vmem [shape: f32[128,32], index: 1, kind: input, shape index: {}]
  %s2 = inlined_call_operand.vmem [shape: f32[1,32], index: 2, kind: input, shape index: {}]
  %s3 = inlined_call_operand.vmem [shape: f32[32,128], index: 3, kind: input, shape index: {}]
  %s4 = inlined_call_operand.vmem [shape: f32[1,128], index: 4, kind: input, shape index: {}]
  %s5 = inlined_call_operand.vmem [shape: f32[18], index: 5, kind: input, shape index: {}]
  %s6 = inlined_call_operand.<no memory space> [shape: f32[1], index: 6, kind: input, shape index: {}]
  %s7 = inlined_call_operand.hbm [shape: f32[4,16,16,128], index: 7, kind: output, shape index: {}]
  %s8 = sld [smem:[#allocation0]]
  $region69: #{cbam_forward.1} parent=0
    _
  %s10 = ssub.s32 1, %s8
  %s11 = scalar_select 0, %s10, %s8
  %12 = sst [smem:[#allocation4]] %s6
  $region1: #{cbam_forward.1} parent=0
    #allocation5 [shape = 'u8[524288]{0}', space=vmem, size = 0x80000, scoped, tag = 'input window, operand 0']
    #allocation6 [shape = 's32[2]{0}', space=sflag, size = 0x8, scoped, tag = 'scoped memory for cbam_forward.1']
    #allocation7 [shape = 's32[2]{0}', space=sflag, size = 0x8, scoped, tag = 'scoped memory for cbam_forward.1']
    #allocation8 [shape = 's32[2]{0}', space=sflag, size = 0x8, scoped, tag = 'scoped memory for cbam_forward.1']
    #allocation9 [shape = 'u8[512]{0}', space=smem, size = 0x200, scoped, tag = 'input window, operand 5, single buffered']
    #allocation10 [shape = 'u8[524288]{0}', space=vmem, size = 0x80000, scoped, tag = 'output window, operand 0']
    %13 = vsyncpa [#allocation6], 0
    %s14 = scalar_lea.sflag [#allocation6], 1
    %15 = vsyncpa %s14, 0
    %16 = vsyncpa [#allocation8], 0
    %17 = vsyncpa [#allocation7], 0
    %s18 = scalar_lea.sflag [#allocation7], 1
    %19 = vsyncpa %s18, 0
    loop: start=0, step=1, limit=4
    $region2: #{cbam_forward.1} parent=1 // loop_pre_header
      _
    $region3: #{cbam_forward.1} parent=1 // loop_header
      %s21 = sphi 0, %s25
      %p22 = scmp.ge.s32.totalorder %s21, 4
      %s31 = sphi 0, %s33
      %s34 = sphi 0, %s31
      %s35 = sphi 0, %s34
      %s51 = sphi 0, %s35
      %s55 = sphi 0, %s55
      %s57 = sphi 0, %s55
      %s58 = sphi 0, %s57
      %s72 = sphi 0, %s58
      %s76 = sphi 0, %s76
      %s78 = sphi 0, %s76
      %s79 = sphi 0, %s78
      %s93 = sphi 0, %s79
      %s97 = sphi 0, %s97
      %s99 = sphi 0, %s97
      %s100 = sphi 0, %s99
      %s114 = sphi 0, %s100
      %s118 = sphi 0, %s118
      %s120 = sphi 0, %s118
      %s121 = sphi 0, %s120
      %s135 = sphi 0, %s121
      %s139 = sphi 0, %s139
      %s141 = sphi 0, %s139
      %s142 = sphi 0, %s141
      %s156 = sphi 0, %s142
      %s160 = sphi 0, %s160
      %s162 = sphi 0, %s160
      %s163 = sphi 0, %s162
      %s177 = sphi 0, %s163
      %s183 = sphi 0, %s185
      %s186 = sphi 0, %s183
      %s187 = sphi 0, %s186
      %s203 = sphi 0, %s187
    $region4: #{cbam_forward.1} parent=1 // loop_header_branch
      %24 = sbr.rel (%p22) target = $region8
    $region5: #{cbam_forward.1} parent=1 // loop_body
      %s26 = ssub.s32 %s21, 1
      %s27 = ssub.s32 %s21, 2
      %s28 = sadd.s32 %s21, 1
      %s29 = ssub.s32 %s21, %s28
      %p30 = scmp.eq.s32.totalorder %s29, 0
      %s32 = sadd.s32 %s31, 1
      %s33 = scalar_select %p30, %s31, %s32
      %p36 = pneg %p30
      %p37 = scmp.eq.s32.totalorder %s21, 1
      %p38 = por %p36, %p37
      %p39 = scmp.ne.s32.totalorder %s31, %s34
      %p40 = scmp.eq.s32.totalorder %s21, 0
      %p41 = por %p39, %p40
      %p42 = scmp.ne.s32.totalorder %s31, %s34
      %p43 = scmp.eq.s32.totalorder %s26, 1
      %p44 = por %p42, %p43
      %p45 = scmp.ne.s32.totalorder %s34, %s35
      %p46 = scmp.eq.s32.totalorder %s26, 0
      %p47 = por %p45, %p46
      %p48 = scmp.ne.s32.totalorder %s34, %s35
      %p49 = scmp.eq.s32.totalorder %s27, 1
      %p50 = por %p48, %p49
      %p52 = scmp.ne.s32.totalorder %s35, %s51
      %p53 = scmp.eq.s32.totalorder %s27, 0
      %p54 = por %p52, %p53
      %s56 = sadd.s32 %s55, 1
      %p59 = scmp.eq.s32.totalorder %s21, 1
      %p60 = scmp.ne.s32.totalorder %s55, %s57
      %p61 = scmp.eq.s32.totalorder %s21, 0
      %p62 = por %p60, %p61
      %p63 = scmp.ne.s32.totalorder %s55, %s57
      %p64 = scmp.eq.s32.totalorder %s26, 1
      %p65 = por %p63, %p64
      %p66 = scmp.ne.s32.totalorder %s57, %s58
      %p67 = scmp.eq.s32.totalorder %s26, 0
      %p68 = por %p66, %p67
      %p69 = scmp.ne.s32.totalorder %s57, %s58
      %p70 = scmp.eq.s32.totalorder %s27, 1
      %p71 = por %p69, %p70
      %p73 = scmp.ne.s32.totalorder %s58, %s72
      %p74 = scmp.eq.s32.totalorder %s27, 0
      %p75 = por %p73, %p74
      %s77 = sadd.s32 %s76, 1
      %p80 = scmp.eq.s32.totalorder %s21, 1
      %p81 = scmp.ne.s32.totalorder %s76, %s78
      %p82 = scmp.eq.s32.totalorder %s21, 0
      %p83 = por %p81, %p82
      %p84 = scmp.ne.s32.totalorder %s76, %s78
      %p85 = scmp.eq.s32.totalorder %s26, 1
      %p86 = por %p84, %p85
      %p87 = scmp.ne.s32.totalorder %s78, %s79
      %p88 = scmp.eq.s32.totalorder %s26, 0
      %p89 = por %p87, %p88
      %p90 = scmp.ne.s32.totalorder %s78, %s79
      %p91 = scmp.eq.s32.totalorder %s27, 1
      %p92 = por %p90, %p91
      %p94 = scmp.ne.s32.totalorder %s79, %s93
      %p95 = scmp.eq.s32.totalorder %s27, 0
      %p96 = por %p94, %p95
      %s98 = sadd.s32 %s97, 1
      %p101 = scmp.eq.s32.totalorder %s21, 1
      %p102 = scmp.ne.s32.totalorder %s97, %s99
      %p103 = scmp.eq.s32.totalorder %s21, 0
      %p104 = por %p102, %p103
      %p105 = scmp.ne.s32.totalorder %s97, %s99
      %p106 = scmp.eq.s32.totalorder %s26, 1
      %p107 = por %p105, %p106
      %p108 = scmp.ne.s32.totalorder %s99, %s100
      %p109 = scmp.eq.s32.totalorder %s26, 0
      %p110 = por %p108, %p109
      %p111 = scmp.ne.s32.totalorder %s99, %s100
      %p112 = scmp.eq.s32.totalorder %s27, 1
      %p113 = por %p111, %p112
      %p115 = scmp.ne.s32.totalorder %s100, %s114
      %p116 = scmp.eq.s32.totalorder %s27, 0
      %p117 = por %p115, %p116
      %s119 = sadd.s32 %s118, 1
      %p122 = scmp.eq.s32.totalorder %s21, 1
      %p123 = scmp.ne.s32.totalorder %s118, %s120
      %p124 = scmp.eq.s32.totalorder %s21, 0
      %p125 = por %p123, %p124
      %p126 = scmp.ne.s32.totalorder %s118, %s120
      %p127 = scmp.eq.s32.totalorder %s26, 1
      %p128 = por %p126, %p127
      %p129 = scmp.ne.s32.totalorder %s120, %s121
      %p130 = scmp.eq.s32.totalorder %s26, 0
      %p131 = por %p129, %p130
      %p132 = scmp.ne.s32.totalorder %s120, %s121
      %p133 = scmp.eq.s32.totalorder %s27, 1
      %p134 = por %p132, %p133
      %p136 = scmp.ne.s32.totalorder %s121, %s135
      %p137 = scmp.eq.s32.totalorder %s27, 0
      %p138 = por %p136, %p137
      %s140 = sadd.s32 %s139, 1
      %p143 = scmp.eq.s32.totalorder %s21, 1
      %p144 = scmp.ne.s32.totalorder %s139, %s141
      %p145 = scmp.eq.s32.totalorder %s21, 0
      %p146 = por %p144, %p145
      %p147 = scmp.ne.s32.totalorder %s139, %s141
      %p148 = scmp.eq.s32.totalorder %s26, 1
      %p149 = por %p147, %p148
      %p150 = scmp.ne.s32.totalorder %s141, %s142
      %p151 = scmp.eq.s32.totalorder %s26, 0
      %p152 = por %p150, %p151
      %p153 = scmp.ne.s32.totalorder %s141, %s142
      %p154 = scmp.eq.s32.totalorder %s27, 1
      %p155 = por %p153, %p154
      %p157 = scmp.ne.s32.totalorder %s142, %s156
      %p158 = scmp.eq.s32.totalorder %s27, 0
      %p159 = por %p157, %p158
      %s161 = sadd.s32 %s160, 1
      %p164 = scmp.eq.s32.totalorder %s21, 1
      %p165 = scmp.ne.s32.totalorder %s160, %s162
      %p166 = scmp.eq.s32.totalorder %s21, 0
      %p167 = por %p165, %p166
      %p168 = scmp.ne.s32.totalorder %s160, %s162
      %p169 = scmp.eq.s32.totalorder %s26, 1
      %p170 = por %p168, %p169
      %p171 = scmp.ne.s32.totalorder %s162, %s163
      %p172 = scmp.eq.s32.totalorder %s26, 0
      %p173 = por %p171, %p172
      %p174 = scmp.ne.s32.totalorder %s162, %s163
      %p175 = scmp.eq.s32.totalorder %s27, 1
      %p176 = por %p174, %p175
      %p178 = scmp.ne.s32.totalorder %s163, %s177
      %p179 = scmp.eq.s32.totalorder %s27, 0
      %p180 = por %p178, %p179
      %s181 = ssub.s32 %s21, %s28
      %p182 = scmp.eq.s32.totalorder %s181, 0
      %s184 = sadd.s32 %s183, 1
      %s185 = scalar_select %p182, %s183, %s184
      %p188 = pneg %p182
      %p189 = scmp.eq.s32.totalorder %s21, 1
      %p190 = por %p188, %p189
      %p191 = scmp.ne.s32.totalorder %s183, %s186
      %p192 = scmp.eq.s32.totalorder %s21, 0
      %p193 = por %p191, %p192
      %p194 = scmp.ne.s32.totalorder %s183, %s186
      %p195 = scmp.eq.s32.totalorder %s26, 1
      %p196 = por %p194, %p195
      %p197 = scmp.ne.s32.totalorder %s186, %s187
      %p198 = scmp.eq.s32.totalorder %s26, 0
      %p199 = por %p197, %p198
      %p200 = scmp.ne.s32.totalorder %s186, %s187
      %p201 = scmp.eq.s32.totalorder %s27, 1
      %p202 = por %p200, %p201
      %p204 = scmp.ne.s32.totalorder %s187, %s203
      %p205 = scmp.eq.s32.totalorder %s27, 0
      %p206 = por %p204, %p205
      %p207 = scmp.le.s32.totalorder 1, %s21
      %p208 = scmp.lt.s32.totalorder %s21, 3
      %p209 = pnand %p207, %p208
      %p210 = pneg %p209
      // Predicated region
      $region9: #{cbam_forward.1} parent=5 // pred_check
        _
      $region10: #{cbam_forward.1} parent=5 // pred_check_branch
        %212 = sbr.rel (%p209) target = $region12
      $region11: #{cbam_forward.1} parent=5 // pred_region
        %s213 = ssub.s32 %s21, 1
        // Predicated region
        $region13: #{cbam_forward.1} parent=11 // pred_check
          %p214 = pneg %p68
        $region14: #{cbam_forward.1} parent=11 // pred_check_branch
          %216 = sbr.rel (%p214) target = $region16
        $region15: #{cbam_forward.1} parent=11 // pred_region
          _
        $region16: #{cbam_forward.1} parent=11 // pred_fallthru
          _
        // Predicated region
        $region17: #{cbam_forward.1} parent=11 // pred_check
          %p217 = pneg %p89
        $region18: #{cbam_forward.1} parent=11 // pred_check_branch
          %219 = sbr.rel (%p217) target = $region20
        $region19: #{cbam_forward.1} parent=11 // pred_region
          _
        $region20: #{cbam_forward.1} parent=11 // pred_fallthru
          _
        // Predicated region
        $region21: #{cbam_forward.1} parent=11 // pred_check
          %p220 = pneg %p110
        $region22: #{cbam_forward.1} parent=11 // pred_check_branch
          %222 = sbr.rel (%p220) target = $region24
        $region23: #{cbam_forward.1} parent=11 // pred_region
          _
        $region24: #{cbam_forward.1} parent=11 // pred_fallthru
          _
        // Predicated region
        $region25: #{cbam_forward.1} parent=11 // pred_check
          %p223 = pneg %p131
        $region26: #{cbam_forward.1} parent=11 // pred_check_branch
          %225 = sbr.rel (%p223) target = $region28
        $region27: #{cbam_forward.1} parent=11 // pred_region
          _
        $region28: #{cbam_forward.1} parent=11 // pred_fallthru
          _
        // Predicated region
        $region29: #{cbam_forward.1} parent=11 // pred_check
          %p226 = pneg %p152
        $region30: #{cbam_forward.1} parent=11 // pred_check_branch
          %228 = sbr.rel (%p226) target = $region32
        $region31: #{cbam_forward.1} parent=11 // pred_region
          %s230 = ssub.s32 16, 16
          %231 = vsyncadd [#allocation8], %s230
          %s233 = sshll.u32 %s5, 4
          %s234 = int_to_ptr.vmem [resolvable:$true] %s233
          %236 = dma.vmem_to_smem %s234, 16, [#allocation9], [#allocation8]
        $region32: #{cbam_forward.1} parent=11 // pred_fallthru
          _
        // Predicated region
        $region33: #{cbam_forward.1} parent=11 // pred_check
          %p237 = pneg %p173
        $region34: #{cbam_forward.1} parent=11 // pred_check_branch
          %239 = sbr.rel (%p237) target = $region36
        $region35: #{cbam_forward.1} parent=11 // pred_region
          _
        $region36: #{cbam_forward.1} parent=11 // pred_fallthru
          _
      $region12: #{cbam_forward.1} parent=5 // pred_fallthru
        _
      %p240 = scmp.lt.s32.totalorder %s21, 2
      // Predicated region
      $region37: #{cbam_forward.1} parent=5 // pred_check
        %p241 = pneg %p240
      $region38: #{cbam_forward.1} parent=5 // pred_check_branch
        %243 = sbr.rel (%p241) target = $region40
      $region39: #{cbam_forward.1} parent=5 // pred_region
        // Predicated region
        $region41: #{cbam_forward.1} parent=39 // pred_check
          %p244 = pneg %p41
        $region42: #{cbam_forward.1} parent=39 // pred_check_branch
          %246 = sbr.rel (%p244) target = $region44
        $region43: #{cbam_forward.1} parent=39 // pred_region
          %s247 = sand.u32 %s31, 1
          %s248 = scalar_lea.sflag [#allocation6], %s247
          %s249 = sand.u32 %s31, 1
          %s250 = smul.addr %s249, 512
          %s251 = scalar_lea.vmem [#allocation5], %s250
          %s252 = smul.u32 2, %s21
          %s254 = ssub.s32 8192, 8192
          %255 = vsyncadd %s248, %s254
          %s256 = smul.addr %s252, 32
          %s257 = smul.addr %s256, 128
          %s258 = scalar_lea.hbm %s0, %s257
          %s259 = sshll.u32 %s251, 4
          %s260 = int_to_ptr.vmem [resolvable:$true] %s259
          %265 = dma.hbm_to_vmem [thread:$0]  %s258, 8192, %s260, %s248, 128, 128, 8
        $region44: #{cbam_forward.1} parent=39 // pred_fallthru
          _
      $region40: #{cbam_forward.1} parent=5 // pred_fallthru
        _
      %p266 = scmp.le.s32.totalorder 1, %s21
      %p267 = scmp.lt.s32.totalorder %s21, 3
      %p268 = pnand %p266, %p267
      %p269 = pneg %p268
      // Predicated region
      $region45: #{cbam_forward.1} parent=5 // pred_check
        _
      $region46: #{cbam_forward.1} parent=5 // pred_check_branch
        %271 = sbr.rel (%p268) target = $region48
      $region47: #{cbam_forward.1} parent=5 // pred_region
        %s272 = ssub.s32 %s21, 1
        %s273 = sand.u32 %s34, 1
        %s274 = scalar_lea.sflag [#allocation6], %s273
        %s275 = sand.u32 %s34, 1
        %s276 = smul.addr %s275, 512
        %s277 = scalar_lea.vmem [#allocation5], %s276
        // Predicated region
        $region49: #{cbam_forward.1} parent=47 // pred_check
          %p278 = pneg %p47
        $region50: #{cbam_forward.1} parent=47 // pred_check_branch
          %280 = sbr.rel (%p278) target = $region52
        $region51: #{cbam_forward.1} parent=47 // pred_region
          %281 = dma.done %s274, 8192
        $region52: #{cbam_forward.1} parent=47 // pred_fallthru
          _
        // Predicated region
        $region53: #{cbam_forward.1} parent=47 // pred_check
          %p282 = pneg %p152
        $region54: #{cbam_forward.1} parent=47 // pred_check_branch
          %284 = sbr.rel (%p282) target = $region56
        $region55: #{cbam_forward.1} parent=47 // pred_region
          %285 = dma.done [#allocation8], 16
        $region56: #{cbam_forward.1} parent=47 // pred_fallthru
          _
        %286 = sfence
        %s287 = sand.u32 %s34, 1
        %s288 = scalar_lea.sflag [#allocation6], %s287
        %s289 = sand.u32 %s34, 1
        %s290 = smul.addr %s289, 512
        %s291 = scalar_lea.vmem [#allocation5], %s290
        %p292 = pneg %p47
        %p293 = pneg %p44
        %p294 = pneg %p68
        %p295 = pneg %p65
        %p296 = pneg %p89
        %p297 = pneg %p86
        %p298 = pneg %p110
        %p299 = pneg %p107
        %p300 = pneg %p131
        %p301 = pneg %p128
        %p302 = pneg %p152
        %p303 = pneg %p149
        %p304 = pneg %p173
        %p305 = pneg %p170
        %p306 = pneg %p199
        %p307 = pneg %p196
        %s308 = sand.u32 %s186, 1
        %s309 = scalar_lea.sflag [#allocation7], %s308
        %s310 = sand.u32 %s186, 1
        %s311 = smul.addr %s310, 512
        %s312 = scalar_lea.vmem [#allocation10], %s311
        %s313 = smul.u32 2, %s26
        %s314 = smul.u32 2, %s26
        %v315 = vld [vmem:[%s277] sm:$0xff]
        %v316 = vld [vmem:[%s277 + $0x8] sm:$0xff]
        %v317 = vld [vmem:[%s277 + $0x10] sm:$0xff]
        %v318 = vld [vmem:[%s277 + $0x18] sm:$0xff]
        %v319 = vld [vmem:[%s277 + $0x20] sm:$0xff]
        %v320 = vld [vmem:[%s277 + $0x28] sm:$0xff]
        %v321 = vld [vmem:[%s277 + $0x30] sm:$0xff]
        %v322 = vld [vmem:[%s277 + $0x38] sm:$0xff]
        %v323 = vld [vmem:[%s277 + $0x40] sm:$0xff]
        %v324 = vld [vmem:[%s277 + $0x48] sm:$0xff]
        %v325 = vld [vmem:[%s277 + $0x50] sm:$0xff]
        %v326 = vld [vmem:[%s277 + $0x58] sm:$0xff]
        %v327 = vld [vmem:[%s277 + $0x60] sm:$0xff]
        %v328 = vld [vmem:[%s277 + $0x68] sm:$0xff]
        %v329 = vld [vmem:[%s277 + $0x70] sm:$0xff]
        %v330 = vld [vmem:[%s277 + $0x78] sm:$0xff]
        %v331 = vld [vmem:[%s277 + $0x80] sm:$0xff]
        %v332 = vld [vmem:[%s277 + $0x88] sm:$0xff]
        %v333 = vld [vmem:[%s277 + $0x90] sm:$0xff]
        %v334 = vld [vmem:[%s277 + $0x98] sm:$0xff]
        %v335 = vld [vmem:[%s277 + $0xa0] sm:$0xff]
        %v336 = vld [vmem:[%s277 + $0xa8] sm:$0xff]
        %v337 = vld [vmem:[%s277 + $0xb0] sm:$0xff]
        %v338 = vld [vmem:[%s277 + $0xb8] sm:$0xff]
        %v339 = vld [vmem:[%s277 + $0xc0] sm:$0xff]
        %v340 = vld [vmem:[%s277 + $0xc8] sm:$0xff]
        %v341 = vld [vmem:[%s277 + $0xd0] sm:$0xff]
        %v342 = vld [vmem:[%s277 + $0xd8] sm:$0xff]
        %v343 = vld [vmem:[%s277 + $0xe0] sm:$0xff]
        %v344 = vld [vmem:[%s277 + $0xe8] sm:$0xff]
        %v345 = vld [vmem:[%s277 + $0xf0] sm:$0xff]
        %v346 = vld [vmem:[%s277 + $0xf8] sm:$0xff]
        %v347 = vld [vmem:[%s277 + $0x100] sm:$0xff]
        %v348 = vld [vmem:[%s277 + $0x108] sm:$0xff]
        %v349 = vld [vmem:[%s277 + $0x110] sm:$0xff]
        %v350 = vld [vmem:[%s277 + $0x118] sm:$0xff]
        %v351 = vld [vmem:[%s277 + $0x120] sm:$0xff]
        %v352 = vld [vmem:[%s277 + $0x128] sm:$0xff]
        %v353 = vld [vmem:[%s277 + $0x130] sm:$0xff]
        %v354 = vld [vmem:[%s277 + $0x138] sm:$0xff]
        %v355 = vld [vmem:[%s277 + $0x140] sm:$0xff]
        %v356 = vld [vmem:[%s277 + $0x148] sm:$0xff]
        %v357 = vld [vmem:[%s277 + $0x150] sm:$0xff]
        %v358 = vld [vmem:[%s277 + $0x158] sm:$0xff]
        %v359 = vld [vmem:[%s277 + $0x160] sm:$0xff]
        %v360 = vld [vmem:[%s277 + $0x168] sm:$0xff]
        %v361 = vld [vmem:[%s277 + $0x170] sm:$0xff]
        %v362 = vld [vmem:[%s277 + $0x178] sm:$0xff]
        %v363 = vld [vmem:[%s277 + $0x180] sm:$0xff]
        %v364 = vld [vmem:[%s277 + $0x188] sm:$0xff]
        %v365 = vld [vmem:[%s277 + $0x190] sm:$0xff]
        %v366 = vld [vmem:[%s277 + $0x198] sm:$0xff]
        %v367 = vld [vmem:[%s277 + $0x1a0] sm:$0xff]
        %v368 = vld [vmem:[%s277 + $0x1a8] sm:$0xff]
        %v369 = vld [vmem:[%s277 + $0x1b0] sm:$0xff]
        %v370 = vld [vmem:[%s277 + $0x1b8] sm:$0xff]
        %v371 = vld [vmem:[%s277 + $0x1c0] sm:$0xff]
        %v372 = vld [vmem:[%s277 + $0x1c8] sm:$0xff]
        %v373 = vld [vmem:[%s277 + $0x1d0] sm:$0xff]
        %v374 = vld [vmem:[%s277 + $0x1d8] sm:$0xff]
        %v375 = vld [vmem:[%s277 + $0x1e0] sm:$0xff]
        %v376 = vld [vmem:[%s277 + $0x1e8] sm:$0xff]
        %v377 = vld [vmem:[%s277 + $0x1f0] sm:$0xff]
        %v378 = vld [vmem:[%s277 + $0x1f8] sm:$0xff]
        %v379 = vadd.f32 %v315, %v317
        %v380 = vadd.f32 %v379, %v319
        %v381 = vadd.f32 %v380, %v321
        %v382 = vadd.f32 %v381, %v323
        %v383 = vadd.f32 %v382, %v325
        %v384 = vadd.f32 %v383, %v327
        %v385 = vadd.f32 %v384, %v329
        %v386 = vadd.f32 %v385, %v331
        %v387 = vadd.f32 %v386, %v333
        %v388 = vadd.f32 %v387, %v335
        %v389 = vadd.f32 %v388, %v337
        %v390 = vadd.f32 %v389, %v339
        %v391 = vadd.f32 %v390, %v341
        %v392 = vadd.f32 %v391, %v343
        %v393 = vadd.f32 %v392, %v345
        %v394 = vadd.f32 %v316, %v318
        %v395 = vadd.f32 %v394, %v320
        %v396 = vadd.f32 %v395, %v322
        %v397 = vadd.f32 %v396, %v324
        %v398 = vadd.f32 %v397, %v326
        %v399 = vadd.f32 %v398, %v328
        %v400 = vadd.f32 %v399, %v330
        %v401 = vadd.f32 %v400, %v332
        %v402 = vadd.f32 %v401, %v334
        %v403 = vadd.f32 %v402, %v336
        %v404 = vadd.f32 %v403, %v338
        %v405 = vadd.f32 %v404, %v340
        %v406 = vadd.f32 %v405, %v342
        %v407 = vadd.f32 %v406, %v344
        %v408 = vadd.f32 %v407, %v346
        %v409 = vadd.f32 %v347, %v349
        %v410 = vadd.f32 %v409, %v351
        %v411 = vadd.f32 %v410, %v353
        %v412 = vadd.f32 %v411, %v355
        %v413 = vadd.f32 %v412, %v357
        %v414 = vadd.f32 %v413, %v359
        %v415 = vadd.f32 %v414, %v361
        %v416 = vadd.f32 %v415, %v363
        %v417 = vadd.f32 %v416, %v365
        %v418 = vadd.f32 %v417, %v367
        %v419 = vadd.f32 %v418, %v369
        %v420 = vadd.f32 %v419, %v371
        %v421 = vadd.f32 %v420, %v373
        %v422 = vadd.f32 %v421, %v375
        %v423 = vadd.f32 %v422, %v377
        %v424 = vadd.f32 %v348, %v350
        %v425 = vadd.f32 %v424, %v352
        %v426 = vadd.f32 %v425, %v354
        %v427 = vadd.f32 %v426, %v356
        %v428 = vadd.f32 %v427, %v358
        %v429 = vadd.f32 %v428, %v360
        %v430 = vadd.f32 %v429, %v362
        %v431 = vadd.f32 %v430, %v364
        %v432 = vadd.f32 %v431, %v366
        %v433 = vadd.f32 %v432, %v368
        %v434 = vadd.f32 %v433, %v370
        %v435 = vadd.f32 %v434, %v372
        %v436 = vadd.f32 %v435, %v374
        %v437 = vadd.f32 %v436, %v376
        %v438 = vadd.f32 %v437, %v378
        %v439 = vadd.f32 %v393, %v408
        %v440 = vrot.slane %v439, 4
        %v441 = vadd.f32 %v439, %v440
        %v442 = vrot.slane %v441, 2
        %v443 = vadd.f32 %v441, %v442
        %v444 = vrot.slane %v443, 1
        %v445 = vadd.f32 %v443, %v444
        %v446 = vadd.f32 %v423, %v438
        %v447 = vrot.slane %v446, 4
        %v448 = vadd.f32 %v446, %v447
        %v449 = vrot.slane %v448, 2
        %v450 = vadd.f32 %v448, %v449
        %v451 = vrot.slane %v450, 1
        %v452 = vadd.f32 %v450, %v451
        %v453 = vmul.f32 %v445, 0.00390625
        %v454 = vmul.f32 %v452, 0.00390625
        %vm457 = vcmask 1041409
        %v458 = vsel %vm457, %v454, %v453
        %460 = vst [vmem:[#allocation2] sm:$0x3] %v458
        %v461 = vmax.f32 %v315, %v317
        %v462 = vmax.f32 %v461, %v319
        %v463 = vmax.f32 %v462, %v321
        %v464 = vmax.f32 %v463, %v323
        %v465 = vmax.f32 %v464, %v325
        %v466 = vmax.f32 %v465, %v327
        %v467 = vmax.f32 %v466, %v329
        %v468 = vmax.f32 %v467, %v331
        %v469 = vmax.f32 %v468, %v333
        %v470 = vmax.f32 %v469, %v335
        %v471 = vmax.f32 %v470, %v337
        %v472 = vmax.f32 %v471, %v339
        %v473 = vmax.f32 %v472, %v341
        %v474 = vmax.f32 %v473, %v343
        %v475 = vmax.f32 %v474, %v345
        %v476 = vmax.f32 %v316, %v318
        %v477 = vmax.f32 %v476, %v320
        %v478 = vmax.f32 %v477, %v322
        %v479 = vmax.f32 %v478, %v324
        %v480 = vmax.f32 %v479, %v326
        %v481 = vmax.f32 %v480, %v328
        %v482 = vmax.f32 %v481, %v330
        %v483 = vmax.f32 %v482, %v332
        %v484 = vmax.f32 %v483, %v334
        %v485 = vmax.f32 %v484, %v336
        %v486 = vmax.f32 %v485, %v338
        %v487 = vmax.f32 %v486, %v340
        %v488 = vmax.f32 %v487, %v342
        %v489 = vmax.f32 %v488, %v344
        %v490 = vmax.f32 %v489, %v346
        %v491 = vmax.f32 %v347, %v349
        %v492 = vmax.f32 %v491, %v351
        %v493 = vmax.f32 %v492, %v353
        %v494 = vmax.f32 %v493, %v355
        %v495 = vmax.f32 %v494, %v357
        %v496 = vmax.f32 %v495, %v359
        %v497 = vmax.f32 %v496, %v361
        %v498 = vmax.f32 %v497, %v363
        %v499 = vmax.f32 %v498, %v365
        %v500 = vmax.f32 %v499, %v367
        %v501 = vmax.f32 %v500, %v369
        %v502 = vmax.f32 %v501, %v371
        %v503 = vmax.f32 %v502, %v373
        %v504 = vmax.f32 %v503, %v375
        %v505 = vmax.f32 %v504, %v377
        %v506 = vmax.f32 %v348, %v350
        %v507 = vmax.f32 %v506, %v352
        %v508 = vmax.f32 %v507, %v354
        %v509 = vmax.f32 %v508, %v356
        %v510 = vmax.f32 %v509, %v358
        %v511 = vmax.f32 %v510, %v360
        %v512 = vmax.f32 %v511, %v362
        %v513 = vmax.f32 %v512, %v364
        %v514 = vmax.f32 %v513, %v366
        %v515 = vmax.f32 %v514, %v368
        %v516 = vmax.f32 %v515, %v370
        %v517 = vmax.f32 %v516, %v372
        %v518 = vmax.f32 %v517, %v374
        %v519 = vmax.f32 %v518, %v376
        %v520 = vmax.f32 %v519, %v378
        %v521 = vmax.f32 %v475, %v490
        %v522 = vrot.slane %v521, 4
        %v523 = vmax.f32 %v521, %v522
        %v524 = vrot.slane %v523, 2
        %v525 = vmax.f32 %v523, %v524
        %v526 = vrot.slane %v525, 1
        %v527 = vmax.f32 %v525, %v526
        %v528 = vmax.f32 %v505, %v520
        %v529 = vrot.slane %v528, 4
        %v530 = vmax.f32 %v528, %v529
        %v531 = vrot.slane %v530, 2
        %v532 = vmax.f32 %v530, %v531
        %v533 = vrot.slane %v532, 1
        %v534 = vmax.f32 %v532, %v533
        %v537 = vsel %vm457, %v534, %v527
        %539 = vst [vmem:[#allocation2 + $0x2] sm:$0x3] %v537
        %v540 = vld [vmem:[#allocation2] sm:$0xf]
        %v541 = vld [vmem:[%s1] sm:$0xff]
        %v542 = vld [vmem:[%s1 + $0x8] sm:$0xff]
        %v543 = vld [vmem:[%s1 + $0x10] sm:$0xff]
        %v544 = vld [vmem:[%s1 + $0x18] sm:$0xff]
        %v545 = vld [vmem:[%s1 + $0x20] sm:$0xff]
        %v546 = vld [vmem:[%s1 + $0x28] sm:$0xff]
        %v547 = vld [vmem:[%s1 + $0x30] sm:$0xff]
        %v548 = vld [vmem:[%s1 + $0x38] sm:$0xff]
        %v549 = vld [vmem:[%s1 + $0x40] sm:$0xff]
        %v550 = vld [vmem:[%s1 + $0x48] sm:$0xff]
        %v551 = vld [vmem:[%s1 + $0x50] sm:$0xff]
        %v552 = vld [vmem:[%s1 + $0x58] sm:$0xff]
        %v553 = vld [vmem:[%s1 + $0x60] sm:$0xff]
        %v554 = vld [vmem:[%s1 + $0x68] sm:$0xff]
        %v555 = vld [vmem:[%s1 + $0x70] sm:$0xff]
        %v556 = vld [vmem:[%s1 + $0x78] sm:$0xff]
        %v557 = vld [vmem:[%s2] sm:$0x1]
        %v559 = vlaneseq
        %v560 = vshrl.u32 %v559, 7
        %v561 = vsub.s32 0, %v560
        %v562 = vrot.slane %v557, %v561
        %564 = vmatprep.subr.mxu0 0.0
        %565 = vmatpush1.msra.mxu0 %v556
        %566 = vmatprep.subr.mxu0 0.0
        %567 = vmatpush1.msra.mxu0 %v555
        %568 = vmatprep.subr.mxu0 0.0
        %569 = vmatpush1.msra.mxu0 %v554
        %570 = vmatprep.subr.mxu0 0.0
        %571 = vmatpush1.msra.mxu0 %v553
        %572 = vmatprep.subr.mxu0 0.0
        %573 = vmatpush1.msra.mxu0 %v552
        %574 = vmatprep.subr.mxu0 0.0
        %575 = vmatpush1.msra.mxu0 %v551
        %576 = vmatprep.subr.mxu0 0.0
        %577 = vmatpush1.msra.mxu0 %v550
        %578 = vmatprep.subr.mxu0 0.0
        %579 = vmatpush1.msra.mxu0 %v549
        %580 = vmatprep.subr.mxu0 0.0
        %581 = vmatpush1.msra.mxu0 %v548
        %582 = vmatprep.subr.mxu0 0.0
        %583 = vmatpush1.msra.mxu0 %v547
        %584 = vmatprep.subr.mxu0 0.0
        %585 = vmatpush1.msra.mxu0 %v546
        %586 = vmatprep.subr.mxu0 0.0
        %587 = vmatpush1.msra.mxu0 %v545
        %588 = vmatprep.subr.mxu0 0.0
        %589 = vmatpush1.msra.mxu0 %v544
        %590 = vmatprep.subr.mxu0 0.0
        %591 = vmatpush1.msra.mxu0 %v543
        %592 = vmatprep.subr.mxu0 0.0
        %593 = vmatpush1.msra.mxu0 %v542
        %594 = vmatprep.subr.mxu0 0.0
        %595 = vmatpush1.msra.mxu0 %v541
        %596 = vmatprep.subr.mxu0 0.0
        %597 = vmatpush2.msra.mxu0 0.0
        %598 = vmatprep.subr.mxu0 0.0
        %599 = vmatpush2.msra.mxu0 0.0
        %600 = vmatprep.subr.mxu0 0.0
        %601 = vmatpush2.msra.mxu0 0.0
        %602 = vmatprep.subr.mxu0 0.0
        %603 = vmatpush2.msra.mxu0 0.0
        %604 = vmatprep.subr.mxu0 0.0
        %605 = vmatpush2.msra.mxu0 0.0
        %606 = vmatprep.subr.mxu0 0.0
        %607 = vmatpush2.msra.mxu0 0.0
        %608 = vmatprep.subr.mxu0 0.0
        %609 = vmatpush2.msra.mxu0 0.0
        %610 = vmatprep.subr.mxu0 0.0
        %611 = vmatpush2.msra.mxu0 0.0
        %612 = vmatprep.subr.mxu0 0.0
        %613 = vmatpush2.msra.mxu0 0.0
        %614 = vmatprep.subr.mxu0 0.0
        %615 = vmatpush2.msra.mxu0 0.0
        %616 = vmatprep.subr.mxu0 0.0
        %617 = vmatpush2.msra.mxu0 0.0
        %618 = vmatprep.subr.mxu0 0.0
        %619 = vmatpush2.msra.mxu0 0.0
        %620 = vmatprep.subr.mxu0 0.0
        %621 = vmatpush2.msra.mxu0 0.0
        %622 = vmatprep.subr.mxu0 0.0
        %623 = vmatpush2.msra.mxu0 0.0
        %624 = vmatprep.subr.mxu0 0.0
        %625 = vmatpush2.msra.mxu0 0.0
        %626 = vmatprep.subr.mxu0 0.0
        %627 = vmatpush2.msra.mxu0 0.0
        %628 = vmatprep.mubr.f32.mxu0 0.0
        %629 = vmatmul.mubr.f32.gmra.mxu0 %v540
        %v630 = vpop.f32.mrf.mxu0
        %v631 = vadd.f32 %v562, %v630
        %v632 = vpop.f32.mrf.mxu0
        %633 = vdwg.mxu0
        %vm634 = vcmp.gt.f32.partialorder %v631, 0.0
        %v635 = vmin.f32 %v631, 0.0
        %v636 = vmul.f32 %v635, 1.442695
        %v637 = vpow.pop %v636
        %v638 = vsub.f32 %v637, 1.0
        %v639 = vsel %vm634, %v631, %v638
        %v640 = vld [vmem:[%s3] sm:$0xff]
        %v641 = vld [vmem:[%s3 + $0x8] sm:$0xff]
        %v642 = vld [vmem:[%s3 + $0x10] sm:$0xff]
        %v643 = vld [vmem:[%s3 + $0x18] sm:$0xff]
        %v644 = vld [vmem:[%s4] sm:$0x1]
        %v646 = vlaneseq
        %v647 = vshrl.u32 %v646, 7
        %v648 = vsub.s32 0, %v647
        %v649 = vrot.slane %v644, %v648
        %vm651 = vcmask 261120
        %v653 = vsel %vm651, %v639, 0
        %655 = vmatprep.subr.mxu0 0.0
        %656 = vmatpush1.msra.mxu0 0.0
        %657 = vmatprep.subr.mxu0 0.0
        %658 = vmatpush1.msra.mxu0 0.0
        %659 = vmatprep.subr.mxu0 0.0
        %660 = vmatpush1.msra.mxu0 0.0
        %661 = vmatprep.subr.mxu0 0.0
        %662 = vmatpush1.msra.mxu0 0.0
        %663 = vmatprep.subr.mxu0 0.0
        %664 = vmatpush1.msra.mxu0 0.0
        %665 = vmatprep.subr.mxu0 0.0
        %666 = vmatpush1.msra.mxu0 0.0
        %667 = vmatprep.subr.mxu0 0.0
        %668 = vmatpush1.msra.mxu0 0.0
        %669 = vmatprep.subr.mxu0 0.0
        %670 = vmatpush1.msra.mxu0 0.0
        %671 = vmatprep.subr.mxu0 0.0
        %672 = vmatpush1.msra.mxu0 0.0
        %673 = vmatprep.subr.mxu0 0.0
        %674 = vmatpush1.msra.mxu0 0.0
        %675 = vmatprep.subr.mxu0 0.0
        %676 = vmatpush1.msra.mxu0 0.0
        %677 = vmatprep.subr.mxu0 0.0
        %678 = vmatpush1.msra.mxu0 0.0
        %679 = vmatprep.subr.mxu0 0.0
        %680 = vmatpush1.msra.mxu0 %v643
        %681 = vmatprep.subr.mxu0 0.0
        %682 = vmatpush1.msra.mxu0 %v642
        %683 = vmatprep.subr.mxu0 0.0
        %684 = vmatpush1.msra.mxu0 %v641
        %685 = vmatprep.subr.mxu0 0.0
        %686 = vmatpush1.msra.mxu0 %v640
        %687 = vmatprep.subr.mxu0 0.0
        %688 = vmatpush2.msra.mxu0 0.0
        %689 = vmatprep.subr.mxu0 0.0
        %690 = vmatpush2.msra.mxu0 0.0
        %691 = vmatprep.subr.mxu0 0.0
        %692 = vmatpush2.msra.mxu0 0.0
        %693 = vmatprep.subr.mxu0 0.0
        %694 = vmatpush2.msra.mxu0 0.0
        %695 = vmatprep.subr.mxu0 0.0
        %696 = vmatpush2.msra.mxu0 0.0
        %697 = vmatprep.subr.mxu0 0.0
        %698 = vmatpush2.msra.mxu0 0.0
        %699 = vmatprep.subr.mxu0 0.0
        %700 = vmatpush2.msra.mxu0 0.0
        %701 = vmatprep.subr.mxu0 0.0
        %702 = vmatpush2.msra.mxu0 0.0
        %703 = vmatprep.subr.mxu0 0.0
        %704 = vmatpush2.msra.mxu0 0.0
        %705 = vmatprep.subr.mxu0 0.0
        %706 = vmatpush2.msra.mxu0 0.0
        %707 = vmatprep.subr.mxu0 0.0
        %708 = vmatpush2.msra.mxu0 0.0
        %709 = vmatprep.subr.mxu0 0.0
        %710 = vmatpush2.msra.mxu0 0.0
        %711 = vmatprep.subr.mxu0 0.0
        %712 = vmatpush2.msra.mxu0 0.0
        %713 = vmatprep.subr.mxu0 0.0
        %714 = vmatpush2.msra.mxu0 0.0
        %715 = vmatprep.subr.mxu0 0.0
        %716 = vmatpush2.msra.mxu0 0.0
        %717 = vmatprep.subr.mxu0 0.0
        %718 = vmatpush2.msra.mxu0 0.0
        %719 = vmatprep.mubr.f32.mxu0 0.0
        %720 = vmatmul.mubr.f32.gmra.mxu0 %v653
        %v721 = vpop.f32.mrf.mxu0
        %v722 = vadd.f32 %v649, %v721
        %v723 = vpop.f32.mrf.mxu0
        %724 = vdwg.mxu0
        %v726 = vrot.slane %v722, 2
        %v728 = vadd.f32 %v722, %v726
        %v729 = vsub.f32 0.0, %v728
        %v730 = vmul.f32 %v729, 1.442695
        %v731 = vpow.pop %v730
        %v732 = vadd.f32 %v731, 1.0
        %v733 = vrcp.pop %v732
        %v734 = vmul.f32 1.0, %v733
        %v737 = vunpack.c.l.s4 1966171168
        %v738 = vunpack.c.0.s8 %v737
        %v739 = vlaneseq
        %v740 = vshrl.u32 %v739, 7
        %v741 = vsub.s32 %v738, %v740
        %v742 = vrot.slane %v734, %v741
        %v743 = vcombine.high %v742, %v742
        %v745 = vunpack.c.l.s4 1966171168
        %v746 = vunpack.c.0.s8 %v745
        %v747 = vlaneseq
        %v748 = vshrl.u32 %v747, 7
        %v749 = vsub.s32 %v746, %v748
        %v750 = vrot.slane %v742, %v749
        %v752 = vunpack.c.l.s4 1966171168
        %v753 = vunpack.c.0.s8 %v752
        %v754 = vlaneseq
        %v755 = vshrl.u32 %v754, 7
        %v756 = vsub.s32 %v753, %v755
        %v757 = vrot.slane %v743, %v756
        %v758 = vlaneseq
        %v759 = vshrl.u32 %v758, 7
        %v760 = vsub.s32 0, %v759
        %v761 = vrot.slane %v750, %v760
        %v762 = vlaneseq
        %v763 = vshrl.u32 %v762, 7
        %v764 = vsub.s32 0, %v763
        %v765 = vrot.slane %v757, %v764
        %v768 = vmul.f32 %v315, %v761
        %v769 = vmul.f32 %v316, %v761
        %v770 = vmul.f32 %v317, %v761
        %v771 = vmul.f32 %v318, %v761
        %v772 = vmul.f32 %v319, %v761
        %v773 = vmul.f32 %v320, %v761
        %v774 = vmul.f32 %v321, %v761
        %v775 = vmul.f32 %v322, %v761
        %v776 = vmul.f32 %v323, %v761
        %v777 = vmul.f32 %v324, %v761
        %v778 = vmul.f32 %v325, %v761
        %v779 = vmul.f32 %v326, %v761
        %v780 = vmul.f32 %v327, %v761
        %v781 = vmul.f32 %v328, %v761
        %v782 = vmul.f32 %v329, %v761
        %v783 = vmul.f32 %v330, %v761
        %v784 = vmul.f32 %v331, %v761
        %v785 = vmul.f32 %v332, %v761
        %v786 = vmul.f32 %v333, %v761
        %v787 = vmul.f32 %v334, %v761
        %v788 = vmul.f32 %v335, %v761
        %v789 = vmul.f32 %v336, %v761
        %v790 = vmul.f32 %v337, %v761
        %v791 = vmul.f32 %v338, %v761
        %v792 = vmul.f32 %v339, %v761
        %v793 = vmul.f32 %v340, %v761
        %v794 = vmul.f32 %v341, %v761
        %v795 = vmul.f32 %v342, %v761
        %v796 = vmul.f32 %v343, %v761
        %v797 = vmul.f32 %v344, %v761
        %v798 = vmul.f32 %v345, %v761
        %v799 = vmul.f32 %v346, %v761
        %v800 = vmul.f32 %v347, %v765
        %v801 = vmul.f32 %v348, %v765
        %v802 = vmul.f32 %v349, %v765
        %v803 = vmul.f32 %v350, %v765
        %v804 = vmul.f32 %v351, %v765
        %v805 = vmul.f32 %v352, %v765
        %v806 = vmul.f32 %v353, %v765
        %v807 = vmul.f32 %v354, %v765
        %v808 = vmul.f32 %v355, %v765
        %v809 = vmul.f32 %v356, %v765
        %v810 = vmul.f32 %v357, %v765
        %v811 = vmul.f32 %v358, %v765
        %v812 = vmul.f32 %v359, %v765
        %v813 = vmul.f32 %v360, %v765
        %v814 = vmul.f32 %v361, %v765
        %v815 = vmul.f32 %v362, %v765
        %v816 = vmul.f32 %v363, %v765
        %v817 = vmul.f32 %v364, %v765
        %v818 = vmul.f32 %v365, %v765
        %v819 = vmul.f32 %v366, %v765
        %v820 = vmul.f32 %v367, %v765
        %v821 = vmul.f32 %v368, %v765
        %v822 = vmul.f32 %v369, %v765
        %v823 = vmul.f32 %v370, %v765
        %v824 = vmul.f32 %v371, %v765
        %v825 = vmul.f32 %v372, %v765
        %v826 = vmul.f32 %v373, %v765
        %v827 = vmul.f32 %v374, %v765
        %v828 = vmul.f32 %v375, %v765
        %v829 = vmul.f32 %v376, %v765
        %v830 = vmul.f32 %v377, %v765
        %v831 = vmul.f32 %v378, %v765
        %832 = vmax.xlane.f32.xlu0 %v768
        %v833 = vpop.xlane.xlu0 %832
        %834 = vmax.xlane.f32.xlu0 %v769
        %v835 = vpop.xlane.xlu0 %834
        %836 = vmax.xlane.f32.xlu0 %v770
        %v837 = vpop.xlane.xlu0 %836
        %838 = vmax.xlane.f32.xlu0 %v771
        %v839 = vpop.xlane.xlu0 %838
        %840 = vmax.xlane.f32.xlu0 %v772
        %v841 = vpop.xlane.xlu0 %840
        %842 = vmax.xlane.f32.xlu0 %v773
        %v843 = vpop.xlane.xlu0 %842
        %844 = vmax.xlane.f32.xlu0 %v774
        %v845 = vpop.xlane.xlu0 %844
        %846 = vmax.xlane.f32.xlu0 %v775
        %v847 = vpop.xlane.xlu0 %846
        %848 = vmax.xlane.f32.xlu0 %v776
        %v849 = vpop.xlane.xlu0 %848
        %850 = vmax.xlane.f32.xlu0 %v777
        %v851 = vpop.xlane.xlu0 %850
        %852 = vmax.xlane.f32.xlu0 %v778
        %v853 = vpop.xlane.xlu0 %852
        %854 = vmax.xlane.f32.xlu0 %v779
        %v855 = vpop.xlane.xlu0 %854
        %856 = vmax.xlane.f32.xlu0 %v780
        %v857 = vpop.xlane.xlu0 %856
        %858 = vmax.xlane.f32.xlu0 %v781
        %v859 = vpop.xlane.xlu0 %858
        %860 = vmax.xlane.f32.xlu0 %v782
        %v861 = vpop.xlane.xlu0 %860
        %862 = vmax.xlane.f32.xlu0 %v783
        %v863 = vpop.xlane.xlu0 %862
        %864 = vmax.xlane.f32.xlu0 %v784
        %v865 = vpop.xlane.xlu0 %864
        %866 = vmax.xlane.f32.xlu0 %v785
        %v867 = vpop.xlane.xlu0 %866
        %868 = vmax.xlane.f32.xlu0 %v786
        %v869 = vpop.xlane.xlu0 %868
        %870 = vmax.xlane.f32.xlu0 %v787
        %v871 = vpop.xlane.xlu0 %870
        %872 = vmax.xlane.f32.xlu0 %v788
        %v873 = vpop.xlane.xlu0 %872
        %874 = vmax.xlane.f32.xlu0 %v789
        %v875 = vpop.xlane.xlu0 %874
        %876 = vmax.xlane.f32.xlu0 %v790
        %v877 = vpop.xlane.xlu0 %876
        %878 = vmax.xlane.f32.xlu0 %v791
        %v879 = vpop.xlane.xlu0 %878
        %880 = vmax.xlane.f32.xlu0 %v792
        %v881 = vpop.xlane.xlu0 %880
        %882 = vmax.xlane.f32.xlu0 %v793
        %v883 = vpop.xlane.xlu0 %882
        %884 = vmax.xlane.f32.xlu0 %v794
        %v885 = vpop.xlane.xlu0 %884
        %886 = vmax.xlane.f32.xlu0 %v795
        %v887 = vpop.xlane.xlu0 %886
        %888 = vmax.xlane.f32.xlu0 %v796
        %v889 = vpop.xlane.xlu0 %888
        %890 = vmax.xlane.f32.xlu0 %v797
        %v891 = vpop.xlane.xlu0 %890
        %892 = vmax.xlane.f32.xlu0 %v798
        %v893 = vpop.xlane.xlu0 %892
        %894 = vmax.xlane.f32.xlu0 %v799
        %v895 = vpop.xlane.xlu0 %894
        %896 = vmax.xlane.f32.xlu0 %v800
        %v897 = vpop.xlane.xlu0 %896
        %898 = vmax.xlane.f32.xlu0 %v801
        %v899 = vpop.xlane.xlu0 %898
        %900 = vmax.xlane.f32.xlu0 %v802
        %v901 = vpop.xlane.xlu0 %900
        %902 = vmax.xlane.f32.xlu0 %v803
        %v903 = vpop.xlane.xlu0 %902
        %904 = vmax.xlane.f32.xlu0 %v804
        %v905 = vpop.xlane.xlu0 %904
        %906 = vmax.xlane.f32.xlu0 %v805
        %v907 = vpop.xlane.xlu0 %906
        %908 = vmax.xlane.f32.xlu0 %v806
        %v909 = vpop.xlane.xlu0 %908
        %910 = vmax.xlane.f32.xlu0 %v807
        %v911 = vpop.xlane.xlu0 %910
        %912 = vmax.xlane.f32.xlu0 %v808
        %v913 = vpop.xlane.xlu0 %912
        %914 = vmax.xlane.f32.xlu0 %v809
        %v915 = vpop.xlane.xlu0 %914
        %916 = vmax.xlane.f32.xlu0 %v810
        %v917 = vpop.xlane.xlu0 %916
        %918 = vmax.xlane.f32.xlu0 %v811
        %v919 = vpop.xlane.xlu0 %918
        %920 = vmax.xlane.f32.xlu0 %v812
        %v921 = vpop.xlane.xlu0 %920
        %922 = vmax.xlane.f32.xlu0 %v813
        %v923 = vpop.xlane.xlu0 %922
        %924 = vmax.xlane.f32.xlu0 %v814
        %v925 = vpop.xlane.xlu0 %924
        %926 = vmax.xlane.f32.xlu0 %v815
        %v927 = vpop.xlane.xlu0 %926
        %928 = vmax.xlane.f32.xlu0 %v816
        %v929 = vpop.xlane.xlu0 %928
        %930 = vmax.xlane.f32.xlu0 %v817
        %v931 = vpop.xlane.xlu0 %930
        %932 = vmax.xlane.f32.xlu0 %v818
        %v933 = vpop.xlane.xlu0 %932
        %934 = vmax.xlane.f32.xlu0 %v819
        %v935 = vpop.xlane.xlu0 %934
        %936 = vmax.xlane.f32.xlu0 %v820
        %v937 = vpop.xlane.xlu0 %936
        %938 = vmax.xlane.f32.xlu0 %v821
        %v939 = vpop.xlane.xlu0 %938
        %940 = vmax.xlane.f32.xlu0 %v822
        %v941 = vpop.xlane.xlu0 %940
        %942 = vmax.xlane.f32.xlu0 %v823
        %v943 = vpop.xlane.xlu0 %942
        %944 = vmax.xlane.f32.xlu0 %v824
        %v945 = vpop.xlane.xlu0 %944
        %946 = vmax.xlane.f32.xlu0 %v825
        %v947 = vpop.xlane.xlu0 %946
        %948 = vmax.xlane.f32.xlu0 %v826
        %v949 = vpop.xlane.xlu0 %948
        %950 = vmax.xlane.f32.xlu0 %v827
        %v951 = vpop.xlane.xlu0 %950
        %952 = vmax.xlane.f32.xlu0 %v828
        %v953 = vpop.xlane.xlu0 %952
        %954 = vmax.xlane.f32.xlu0 %v829
        %v955 = vpop.xlane.xlu0 %954
        %956 = vmax.xlane.f32.xlu0 %v830
        %v957 = vpop.xlane.xlu0 %956
        %958 = vmax.xlane.f32.xlu0 %v831
        %v959 = vpop.xlane.xlu0 %958
        %960 = vadd.xlane.f32.xlu0 %v768
        %v961 = vpop.xlane.xlu0 %960
        %962 = vadd.xlane.f32.xlu0 %v769
        %v963 = vpop.xlane.xlu0 %962
        %964 = vadd.xlane.f32.xlu0 %v770
        %v965 = vpop.xlane.xlu0 %964
        %966 = vadd.xlane.f32.xlu0 %v771
        %v967 = vpop.xlane.xlu0 %966
        %968 = vadd.xlane.f32.xlu0 %v772
        %v969 = vpop.xlane.xlu0 %968
        %970 = vadd.xlane.f32.xlu0 %v773
        %v971 = vpop.xlane.xlu0 %970
        %972 = vadd.xlane.f32.xlu0 %v774
        %v973 = vpop.xlane.xlu0 %972
        %974 = vadd.xlane.f32.xlu0 %v775
        %v975 = vpop.xlane.xlu0 %974
        %976 = vadd.xlane.f32.xlu0 %v776
        %v977 = vpop.xlane.xlu0 %976
        %978 = vadd.xlane.f32.xlu0 %v777
        %v979 = vpop.xlane.xlu0 %978
        %980 = vadd.xlane.f32.xlu0 %v778
        %v981 = vpop.xlane.xlu0 %980
        %982 = vadd.xlane.f32.xlu0 %v779
        %v983 = vpop.xlane.xlu0 %982
        %984 = vadd.xlane.f32.xlu0 %v780
        %v985 = vpop.xlane.xlu0 %984
        %986 = vadd.xlane.f32.xlu0 %v781
        %v987 = vpop.xlane.xlu0 %986
        %988 = vadd.xlane.f32.xlu0 %v782
        %v989 = vpop.xlane.xlu0 %988
        %990 = vadd.xlane.f32.xlu0 %v783
        %v991 = vpop.xlane.xlu0 %990
        %992 = vadd.xlane.f32.xlu0 %v784
        %v993 = vpop.xlane.xlu0 %992
        %994 = vadd.xlane.f32.xlu0 %v785
        %v995 = vpop.xlane.xlu0 %994
        %996 = vadd.xlane.f32.xlu0 %v786
        %v997 = vpop.xlane.xlu0 %996
        %998 = vadd.xlane.f32.xlu0 %v787
        %v999 = vpop.xlane.xlu0 %998
        %1000 = vadd.xlane.f32.xlu0 %v788
        %v1001 = vpop.xlane.xlu0 %1000
        %1002 = vadd.xlane.f32.xlu0 %v789
        %v1003 = vpop.xlane.xlu0 %1002
        %1004 = vadd.xlane.f32.xlu0 %v790
        %v1005 = vpop.xlane.xlu0 %1004
        %1006 = vadd.xlane.f32.xlu0 %v791
        %v1007 = vpop.xlane.xlu0 %1006
        %1008 = vadd.xlane.f32.xlu0 %v792
        %v1009 = vpop.xlane.xlu0 %1008
        %1010 = vadd.xlane.f32.xlu0 %v793
        %v1011 = vpop.xlane.xlu0 %1010
        %1012 = vadd.xlane.f32.xlu0 %v794
        %v1013 = vpop.xlane.xlu0 %1012
        %1014 = vadd.xlane.f32.xlu0 %v795
        %v1015 = vpop.xlane.xlu0 %1014
        %1016 = vadd.xlane.f32.xlu0 %v796
        %v1017 = vpop.xlane.xlu0 %1016
        %1018 = vadd.xlane.f32.xlu0 %v797
        %v1019 = vpop.xlane.xlu0 %1018
        %1020 = vadd.xlane.f32.xlu0 %v798
        %v1021 = vpop.xlane.xlu0 %1020
        %1022 = vadd.xlane.f32.xlu0 %v799
        %v1023 = vpop.xlane.xlu0 %1022
        %1024 = vadd.xlane.f32.xlu0 %v800
        %v1025 = vpop.xlane.xlu0 %1024
        %1026 = vadd.xlane.f32.xlu0 %v801
        %v1027 = vpop.xlane.xlu0 %1026
        %1028 = vadd.xlane.f32.xlu0 %v802
        %v1029 = vpop.xlane.xlu0 %1028
        %1030 = vadd.xlane.f32.xlu0 %v803
        %v1031 = vpop.xlane.xlu0 %1030
        %1032 = vadd.xlane.f32.xlu0 %v804
        %v1033 = vpop.xlane.xlu0 %1032
        %1034 = vadd.xlane.f32.xlu0 %v805
        %v1035 = vpop.xlane.xlu0 %1034
        %1036 = vadd.xlane.f32.xlu0 %v806
        %v1037 = vpop.xlane.xlu0 %1036
        %1038 = vadd.xlane.f32.xlu0 %v807
        %v1039 = vpop.xlane.xlu0 %1038
        %1040 = vadd.xlane.f32.xlu0 %v808
        %v1041 = vpop.xlane.xlu0 %1040
        %1042 = vadd.xlane.f32.xlu0 %v809
        %v1043 = vpop.xlane.xlu0 %1042
        %1044 = vadd.xlane.f32.xlu0 %v810
        %v1045 = vpop.xlane.xlu0 %1044
        %1046 = vadd.xlane.f32.xlu0 %v811
        %v1047 = vpop.xlane.xlu0 %1046
        %1048 = vadd.xlane.f32.xlu0 %v812
        %v1049 = vpop.xlane.xlu0 %1048
        %1050 = vadd.xlane.f32.xlu0 %v813
        %v1051 = vpop.xlane.xlu0 %1050
        %1052 = vadd.xlane.f32.xlu0 %v814
        %v1053 = vpop.xlane.xlu0 %1052
        %1054 = vadd.xlane.f32.xlu0 %v815
        %v1055 = vpop.xlane.xlu0 %1054
        %1056 = vadd.xlane.f32.xlu0 %v816
        %v1057 = vpop.xlane.xlu0 %1056
        %1058 = vadd.xlane.f32.xlu0 %v817
        %v1059 = vpop.xlane.xlu0 %1058
        %1060 = vadd.xlane.f32.xlu0 %v818
        %v1061 = vpop.xlane.xlu0 %1060
        %1062 = vadd.xlane.f32.xlu0 %v819
        %v1063 = vpop.xlane.xlu0 %1062
        %1064 = vadd.xlane.f32.xlu0 %v820
        %v1065 = vpop.xlane.xlu0 %1064
        %1066 = vadd.xlane.f32.xlu0 %v821
        %v1067 = vpop.xlane.xlu0 %1066
        %1068 = vadd.xlane.f32.xlu0 %v822
        %v1069 = vpop.xlane.xlu0 %1068
        %1070 = vadd.xlane.f32.xlu0 %v823
        %v1071 = vpop.xlane.xlu0 %1070
        %1072 = vadd.xlane.f32.xlu0 %v824
        %v1073 = vpop.xlane.xlu0 %1072
        %1074 = vadd.xlane.f32.xlu0 %v825
        %v1075 = vpop.xlane.xlu0 %1074
        %1076 = vadd.xlane.f32.xlu0 %v826
        %v1077 = vpop.xlane.xlu0 %1076
        %1078 = vadd.xlane.f32.xlu0 %v827
        %v1079 = vpop.xlane.xlu0 %1078
        %1080 = vadd.xlane.f32.xlu0 %v828
        %v1081 = vpop.xlane.xlu0 %1080
        %1082 = vadd.xlane.f32.xlu0 %v829
        %v1083 = vpop.xlane.xlu0 %1082
        %1084 = vadd.xlane.f32.xlu0 %v830
        %v1085 = vpop.xlane.xlu0 %1084
        %1086 = vadd.xlane.f32.xlu0 %v831
        %v1087 = vpop.xlane.xlu0 %1086
        %v1088 = vmul.f32 %v961, 0.0078125
        %v1089 = vmul.f32 %v963, 0.0078125
        %v1090 = vmul.f32 %v965, 0.0078125
        %v1091 = vmul.f32 %v967, 0.0078125
        %v1092 = vmul.f32 %v969, 0.0078125
        %v1093 = vmul.f32 %v971, 0.0078125
        %v1094 = vmul.f32 %v973, 0.0078125
        %v1095 = vmul.f32 %v975, 0.0078125
        %v1096 = vmul.f32 %v977, 0.0078125
        %v1097 = vmul.f32 %v979, 0.0078125
        %v1098 = vmul.f32 %v981, 0.0078125
        %v1099 = vmul.f32 %v983, 0.0078125
        %v1100 = vmul.f32 %v985, 0.0078125
        %v1101 = vmul.f32 %v987, 0.0078125
        %v1102 = vmul.f32 %v989, 0.0078125
        %v1103 = vmul.f32 %v991, 0.0078125
        %v1104 = vmul.f32 %v993, 0.0078125
        %v1105 = vmul.f32 %v995, 0.0078125
        %v1106 = vmul.f32 %v997, 0.0078125
        %v1107 = vmul.f32 %v999, 0.0078125
        %v1108 = vmul.f32 %v1001, 0.0078125
        %v1109 = vmul.f32 %v1003, 0.0078125
        %v1110 = vmul.f32 %v1005, 0.0078125
        %v1111 = vmul.f32 %v1007, 0.0078125
        %v1112 = vmul.f32 %v1009, 0.0078125
        %v1113 = vmul.f32 %v1011, 0.0078125
        %v1114 = vmul.f32 %v1013, 0.0078125
        %v1115 = vmul.f32 %v1015, 0.0078125
        %v1116 = vmul.f32 %v1017, 0.0078125
        %v1117 = vmul.f32 %v1019, 0.0078125
        %v1118 = vmul.f32 %v1021, 0.0078125
        %v1119 = vmul.f32 %v1023, 0.0078125
        %v1120 = vmul.f32 %v1025, 0.0078125
        %v1121 = vmul.f32 %v1027, 0.0078125
        %v1122 = vmul.f32 %v1029, 0.0078125
        %v1123 = vmul.f32 %v1031, 0.0078125
        %v1124 = vmul.f32 %v1033, 0.0078125
        %v1125 = vmul.f32 %v1035, 0.0078125
        %v1126 = vmul.f32 %v1037, 0.0078125
        %v1127 = vmul.f32 %v1039, 0.0078125
        %v1128 = vmul.f32 %v1041, 0.0078125
        %v1129 = vmul.f32 %v1043, 0.0078125
        %v1130 = vmul.f32 %v1045, 0.0078125
        %v1131 = vmul.f32 %v1047, 0.0078125
        %v1132 = vmul.f32 %v1049, 0.0078125
        %v1133 = vmul.f32 %v1051, 0.0078125
        %v1134 = vmul.f32 %v1053, 0.0078125
        %v1135 = vmul.f32 %v1055, 0.0078125
        %v1136 = vmul.f32 %v1057, 0.0078125
        %v1137 = vmul.f32 %v1059, 0.0078125
        %v1138 = vmul.f32 %v1061, 0.0078125
        %v1139 = vmul.f32 %v1063, 0.0078125
        %v1140 = vmul.f32 %v1065, 0.0078125
        %v1141 = vmul.f32 %v1067, 0.0078125
        %v1142 = vmul.f32 %v1069, 0.0078125
        %v1143 = vmul.f32 %v1071, 0.0078125
        %v1144 = vmul.f32 %v1073, 0.0078125
        %v1145 = vmul.f32 %v1075, 0.0078125
        %v1146 = vmul.f32 %v1077, 0.0078125
        %v1147 = vmul.f32 %v1079, 0.0078125
        %v1148 = vmul.f32 %v1081, 0.0078125
        %v1149 = vmul.f32 %v1083, 0.0078125
        %v1150 = vmul.f32 %v1085, 0.0078125
        %v1151 = vmul.f32 %v1087, 0.0078125
        %vm1152 = vcmask 139264
        %1153 = vst.msk [vmem:[#allocation3] sm:$0x1] %vm1152, 0.0
        %1154 = vst.msk [vmem:[#allocation3 + $0x18] sm:$0x1] %vm1152, 0.0
        %1155 = vst.msk [vmem:[#allocation3 + $0x30] sm:$0x1] %vm1152, 0.0
        %1156 = vst.msk [vmem:[#allocation3 + $0x48] sm:$0x1] %vm1152, 0.0
        %1157 = vst.msk [vmem:[#allocation3 + $0x11] sm:$0x1] %vm1152, 0.0
        %1158 = vst.msk [vmem:[#allocation3 + $0x29] sm:$0x1] %vm1152, 0.0
        %1159 = vst.msk [vmem:[#allocation3 + $0x41] sm:$0x1] %vm1152, 0.0
        %1160 = vst.msk [vmem:[#allocation3 + $0x59] sm:$0x1] %vm1152, 0.0
        %vm1161 = vcmask 7168
        %1162 = vst.msk [vmem:[#allocation3] sm:$0xff] %vm1161, 0.0
        %1163 = vst.msk [vmem:[#allocation3 + $0x8] sm:$0xff] %vm1161, 0.0
        %vm1164 = vcmask 1024
        %1165 = vst.msk [vmem:[#allocation3 + $0x10] sm:$0x3] %vm1164, 0.0
        %1166 = vst.msk [vmem:[#allocation3 + $0x18] sm:$0xff] %vm1161, 0.0
        %1167 = vst.msk [vmem:[#allocation3 + $0x20] sm:$0xff] %vm1161, 0.0
        %1168 = vst.msk [vmem:[#allocation3 + $0x28] sm:$0x3] %vm1164, 0.0
        %1169 = vst.msk [vmem:[#allocation3 + $0x30] sm:$0xff] %vm1161, 0.0
        %1170 = vst.msk [vmem:[#allocation3 + $0x38] sm:$0xff] %vm1161, 0.0
        %1171 = vst.msk [vmem:[#allocation3 + $0x40] sm:$0x3] %vm1164, 0.0
        %1172 = vst.msk [vmem:[#allocation3 + $0x48] sm:$0xff] %vm1161, 0.0
        %1173 = vst.msk [vmem:[#allocation3 + $0x50] sm:$0xff] %vm1161, 0.0
        %1174 = vst.msk [vmem:[#allocation3 + $0x58] sm:$0x3] %vm1164, 0.0
        %vm1175 = vcmask 146568
        %1176 = vst.msk [vmem:[#allocation3] sm:$0xff] %vm1175, 0.0
        %1177 = vst.msk [vmem:[#allocation3 + $0x8] sm:$0xff] %vm1175, 0.0
        %vm1178 = vcmask 140424
        %1179 = vst.msk [vmem:[#allocation3 + $0x10] sm:$0x3] %vm1178, 0.0
        %1180 = vst.msk [vmem:[#allocation3 + $0x18] sm:$0xff] %vm1175, 0.0
        %1181 = vst.msk [vmem:[#allocation3 + $0x20] sm:$0xff] %vm1175, 0.0
        %1182 = vst.msk [vmem:[#allocation3 + $0x28] sm:$0x3] %vm1178, 0.0
        %1183 = vst.msk [vmem:[#allocation3 + $0x30] sm:$0xff] %vm1175, 0.0
        %1184 = vst.msk [vmem:[#allocation3 + $0x38] sm:$0xff] %vm1175, 0.0
        %1185 = vst.msk [vmem:[#allocation3 + $0x40] sm:$0x3] %vm1178, 0.0
        %1186 = vst.msk [vmem:[#allocation3 + $0x48] sm:$0xff] %vm1175, 0.0
        %1187 = vst.msk [vmem:[#allocation3 + $0x50] sm:$0xff] %vm1175, 0.0
        %1188 = vst.msk [vmem:[#allocation3 + $0x58] sm:$0x3] %vm1178, 0.0
        %v1253 = vlaneseq
        %v1254 = vand.u32 %v1253, 127
        %v1255 = vadd.s32 %v1254, 4294967295
        %v1256 = vlaneseq
        %v1257 = vshrl.u32 %v1256, 7
        %v1258 = vsub.s32 %v1255, %v1257
        %v1259 = vrot.slane %v833, %v1258
        %v1260 = vadd.s32 %v1254, 4294967287
        %v1261 = vlaneseq
        %v1262 = vshrl.u32 %v1261, 7
        %v1263 = vsub.s32 %v1260, %v1262
        %v1264 = vrot.slane %v835, %v1263
        %vm1265 = vcmask 138312
        %v1266 = vsel %vm1265, %v1264, %v1259
        %v1267 = vlaneseq
        %v1268 = vshrl.u32 %v1267, 7
        %v1269 = vsub.s32 %v1255, %v1268
        %v1270 = vrot.slane %v837, %v1269
        %v1271 = vlaneseq
        %v1272 = vshrl.u32 %v1271, 7
        %v1273 = vsub.s32 %v1260, %v1272
        %v1274 = vrot.slane %v839, %v1273
        %v1275 = vsel %vm1265, %v1274, %v1270
        %v1276 = vlaneseq
        %v1277 = vshrl.u32 %v1276, 7
        %v1278 = vsub.s32 %v1255, %v1277
        %v1279 = vrot.slane %v841, %v1278
        %v1280 = vlaneseq
        %v1281 = vshrl.u32 %v1280, 7
        %v1282 = vsub.s32 %v1260, %v1281
        %v1283 = vrot.slane %v843, %v1282
        %v1284 = vsel %vm1265, %v1283, %v1279
        %v1285 = vlaneseq
        %v1286 = vshrl.u32 %v1285, 7
        %v1287 = vsub.s32 %v1255, %v1286
        %v1288 = vrot.slane %v845, %v1287
        %v1289 = vlaneseq
        %v1290 = vshrl.u32 %v1289, 7
        %v1291 = vsub.s32 %v1260, %v1290
        %v1292 = vrot.slane %v847, %v1291
        %v1293 = vsel %vm1265, %v1292, %v1288
        %v1294 = vlaneseq
        %v1295 = vshrl.u32 %v1294, 7
        %v1296 = vsub.s32 %v1255, %v1295
        %v1297 = vrot.slane %v849, %v1296
        %v1298 = vlaneseq
        %v1299 = vshrl.u32 %v1298, 7
        %v1300 = vsub.s32 %v1260, %v1299
        %v1301 = vrot.slane %v851, %v1300
        %v1302 = vsel %vm1265, %v1301, %v1297
        %v1303 = vlaneseq
        %v1304 = vshrl.u32 %v1303, 7
        %v1305 = vsub.s32 %v1255, %v1304
        %v1306 = vrot.slane %v853, %v1305
        %v1307 = vlaneseq
        %v1308 = vshrl.u32 %v1307, 7
        %v1309 = vsub.s32 %v1260, %v1308
        %v1310 = vrot.slane %v855, %v1309
        %v1311 = vsel %vm1265, %v1310, %v1306
        %v1312 = vlaneseq
        %v1313 = vshrl.u32 %v1312, 7
        %v1314 = vsub.s32 %v1255, %v1313
        %v1315 = vrot.slane %v857, %v1314
        %v1316 = vlaneseq
        %v1317 = vshrl.u32 %v1316, 7
        %v1318 = vsub.s32 %v1260, %v1317
        %v1319 = vrot.slane %v859, %v1318
        %v1320 = vsel %vm1265, %v1319, %v1315
        %v1321 = vlaneseq
        %v1322 = vshrl.u32 %v1321, 7
        %v1323 = vsub.s32 %v1255, %v1322
        %v1324 = vrot.slane %v861, %v1323
        %v1325 = vlaneseq
        %v1326 = vshrl.u32 %v1325, 7
        %v1327 = vsub.s32 %v1260, %v1326
        %v1328 = vrot.slane %v863, %v1327
        %v1329 = vsel %vm1265, %v1328, %v1324
        %v1330 = vlaneseq
        %v1331 = vshrl.u32 %v1330, 7
        %v1332 = vsub.s32 %v1255, %v1331
        %v1333 = vrot.slane %v865, %v1332
        %v1334 = vlaneseq
        %v1335 = vshrl.u32 %v1334, 7
        %v1336 = vsub.s32 %v1260, %v1335
        %v1337 = vrot.slane %v867, %v1336
        %v1338 = vsel %vm1265, %v1337, %v1333
        %v1339 = vlaneseq
        %v1340 = vshrl.u32 %v1339, 7
        %v1341 = vsub.s32 %v1255, %v1340
        %v1342 = vrot.slane %v869, %v1341
        %v1343 = vlaneseq
        %v1344 = vshrl.u32 %v1343, 7
        %v1345 = vsub.s32 %v1260, %v1344
        %v1346 = vrot.slane %v871, %v1345
        %v1347 = vsel %vm1265, %v1346, %v1342
        %v1348 = vlaneseq
        %v1349 = vshrl.u32 %v1348, 7
        %v1350 = vsub.s32 %v1255, %v1349
        %v1351 = vrot.slane %v873, %v1350
        %v1352 = vlaneseq
        %v1353 = vshrl.u32 %v1352, 7
        %v1354 = vsub.s32 %v1260, %v1353
        %v1355 = vrot.slane %v875, %v1354
        %v1356 = vsel %vm1265, %v1355, %v1351
        %v1357 = vlaneseq
        %v1358 = vshrl.u32 %v1357, 7
        %v1359 = vsub.s32 %v1255, %v1358
        %v1360 = vrot.slane %v877, %v1359
        %v1361 = vlaneseq
        %v1362 = vshrl.u32 %v1361, 7
        %v1363 = vsub.s32 %v1260, %v1362
        %v1364 = vrot.slane %v879, %v1363
        %v1365 = vsel %vm1265, %v1364, %v1360
        %v1366 = vlaneseq
        %v1367 = vshrl.u32 %v1366, 7
        %v1368 = vsub.s32 %v1255, %v1367
        %v1369 = vrot.slane %v881, %v1368
        %v1370 = vlaneseq
        %v1371 = vshrl.u32 %v1370, 7
        %v1372 = vsub.s32 %v1260, %v1371
        %v1373 = vrot.slane %v883, %v1372
        %v1374 = vsel %vm1265, %v1373, %v1369
        %v1375 = vlaneseq
        %v1376 = vshrl.u32 %v1375, 7
        %v1377 = vsub.s32 %v1255, %v1376
        %v1378 = vrot.slane %v885, %v1377
        %v1379 = vlaneseq
        %v1380 = vshrl.u32 %v1379, 7
        %v1381 = vsub.s32 %v1260, %v1380
        %v1382 = vrot.slane %v887, %v1381
        %v1383 = vsel %vm1265, %v1382, %v1378
        %v1384 = vlaneseq
        %v1385 = vshrl.u32 %v1384, 7
        %v1386 = vsub.s32 %v1255, %v1385
        %v1387 = vrot.slane %v889, %v1386
        %v1388 = vlaneseq
        %v1389 = vshrl.u32 %v1388, 7
        %v1390 = vsub.s32 %v1260, %v1389
        %v1391 = vrot.slane %v891, %v1390
        %v1392 = vsel %vm1265, %v1391, %v1387
        %v1393 = vlaneseq
        %v1394 = vshrl.u32 %v1393, 7
        %v1395 = vsub.s32 %v1255, %v1394
        %v1396 = vrot.slane %v893, %v1395
        %v1397 = vlaneseq
        %v1398 = vshrl.u32 %v1397, 7
        %v1399 = vsub.s32 %v1260, %v1398
        %v1400 = vrot.slane %v895, %v1399
        %v1401 = vsel %vm1265, %v1400, %v1396
        %v1402 = vlaneseq
        %v1403 = vshrl.u32 %v1402, 7
        %v1404 = vsub.s32 %v1255, %v1403
        %v1405 = vrot.slane %v897, %v1404
        %v1406 = vlaneseq
        %v1407 = vshrl.u32 %v1406, 7
        %v1408 = vsub.s32 %v1260, %v1407
        %v1409 = vrot.slane %v899, %v1408
        %v1410 = vsel %vm1265, %v1409, %v1405
        %v1411 = vlaneseq
        %v1412 = vshrl.u32 %v1411, 7
        %v1413 = vsub.s32 %v1255, %v1412
        %v1414 = vrot.slane %v901, %v1413
        %v1415 = vlaneseq
        %v1416 = vshrl.u32 %v1415, 7
        %v1417 = vsub.s32 %v1260, %v1416
        %v1418 = vrot.slane %v903, %v1417
        %v1419 = vsel %vm1265, %v1418, %v1414
        %v1420 = vlaneseq
        %v1421 = vshrl.u32 %v1420, 7
        %v1422 = vsub.s32 %v1255, %v1421
        %v1423 = vrot.slane %v905, %v1422
        %v1424 = vlaneseq
        %v1425 = vshrl.u32 %v1424, 7
        %v1426 = vsub.s32 %v1260, %v1425
        %v1427 = vrot.slane %v907, %v1426
        %v1428 = vsel %vm1265, %v1427, %v1423
        %v1429 = vlaneseq
        %v1430 = vshrl.u32 %v1429, 7
        %v1431 = vsub.s32 %v1255, %v1430
        %v1432 = vrot.slane %v909, %v1431
        %v1433 = vlaneseq
        %v1434 = vshrl.u32 %v1433, 7
        %v1435 = vsub.s32 %v1260, %v1434
        %v1436 = vrot.slane %v911, %v1435
        %v1437 = vsel %vm1265, %v1436, %v1432
        %v1438 = vlaneseq
        %v1439 = vshrl.u32 %v1438, 7
        %v1440 = vsub.s32 %v1255, %v1439
        %v1441 = vrot.slane %v913, %v1440
        %v1442 = vlaneseq
        %v1443 = vshrl.u32 %v1442, 7
        %v1444 = vsub.s32 %v1260, %v1443
        %v1445 = vrot.slane %v915, %v1444
        %v1446 = vsel %vm1265, %v1445, %v1441
        %v1447 = vlaneseq
        %v1448 = vshrl.u32 %v1447, 7
        %v1449 = vsub.s32 %v1255, %v1448
        %v1450 = vrot.slane %v917, %v1449
        %v1451 = vlaneseq
        %v1452 = vshrl.u32 %v1451, 7
        %v1453 = vsub.s32 %v1260, %v1452
        %v1454 = vrot.slane %v919, %v1453
        %v1455 = vsel %vm1265, %v1454, %v1450
        %v1456 = vlaneseq
        %v1457 = vshrl.u32 %v1456, 7
        %v1458 = vsub.s32 %v1255, %v1457
        %v1459 = vrot.slane %v921, %v1458
        %v1460 = vlaneseq
        %v1461 = vshrl.u32 %v1460, 7
        %v1462 = vsub.s32 %v1260, %v1461
        %v1463 = vrot.slane %v923, %v1462
        %v1464 = vsel %vm1265, %v1463, %v1459
        %v1465 = vlaneseq
        %v1466 = vshrl.u32 %v1465, 7
        %v1467 = vsub.s32 %v1255, %v1466
        %v1468 = vrot.slane %v925, %v1467
        %v1469 = vlaneseq
        %v1470 = vshrl.u32 %v1469, 7
        %v1471 = vsub.s32 %v1260, %v1470
        %v1472 = vrot.slane %v927, %v1471
        %v1473 = vsel %vm1265, %v1472, %v1468
        %v1474 = vlaneseq
        %v1475 = vshrl.u32 %v1474, 7
        %v1476 = vsub.s32 %v1255, %v1475
        %v1477 = vrot.slane %v929, %v1476
        %v1478 = vlaneseq
        %v1479 = vshrl.u32 %v1478, 7
        %v1480 = vsub.s32 %v1260, %v1479
        %v1481 = vrot.slane %v931, %v1480
        %v1482 = vsel %vm1265, %v1481, %v1477
        %v1483 = vlaneseq
        %v1484 = vshrl.u32 %v1483, 7
        %v1485 = vsub.s32 %v1255, %v1484
        %v1486 = vrot.slane %v933, %v1485
        %v1487 = vlaneseq
        %v1488 = vshrl.u32 %v1487, 7
        %v1489 = vsub.s32 %v1260, %v1488
        %v1490 = vrot.slane %v935, %v1489
        %v1491 = vsel %vm1265, %v1490, %v1486
        %v1492 = vlaneseq
        %v1493 = vshrl.u32 %v1492, 7
        %v1494 = vsub.s32 %v1255, %v1493
        %v1495 = vrot.slane %v937, %v1494
        %v1496 = vlaneseq
        %v1497 = vshrl.u32 %v1496, 7
        %v1498 = vsub.s32 %v1260, %v1497
        %v1499 = vrot.slane %v939, %v1498
        %v1500 = vsel %vm1265, %v1499, %v1495
        %v1501 = vlaneseq
        %v1502 = vshrl.u32 %v1501, 7
        %v1503 = vsub.s32 %v1255, %v1502
        %v1504 = vrot.slane %v941, %v1503
        %v1505 = vlaneseq
        %v1506 = vshrl.u32 %v1505, 7
        %v1507 = vsub.s32 %v1260, %v1506
        %v1508 = vrot.slane %v943, %v1507
        %v1509 = vsel %vm1265, %v1508, %v1504
        %v1510 = vlaneseq
        %v1511 = vshrl.u32 %v1510, 7
        %v1512 = vsub.s32 %v1255, %v1511
        %v1513 = vrot.slane %v945, %v1512
        %v1514 = vlaneseq
        %v1515 = vshrl.u32 %v1514, 7
        %v1516 = vsub.s32 %v1260, %v1515
        %v1517 = vrot.slane %v947, %v1516
        %v1518 = vsel %vm1265, %v1517, %v1513
        %v1519 = vlaneseq
        %v1520 = vshrl.u32 %v1519, 7
        %v1521 = vsub.s32 %v1255, %v1520
        %v1522 = vrot.slane %v949, %v1521
        %v1523 = vlaneseq
        %v1524 = vshrl.u32 %v1523, 7
        %v1525 = vsub.s32 %v1260, %v1524
        %v1526 = vrot.slane %v951, %v1525
        %v1527 = vsel %vm1265, %v1526, %v1522
        %v1528 = vlaneseq
        %v1529 = vshrl.u32 %v1528, 7
        %v1530 = vsub.s32 %v1255, %v1529
        %v1531 = vrot.slane %v953, %v1530
        %v1532 = vlaneseq
        %v1533 = vshrl.u32 %v1532, 7
        %v1534 = vsub.s32 %v1260, %v1533
        %v1535 = vrot.slane %v955, %v1534
        %v1536 = vsel %vm1265, %v1535, %v1531
        %v1537 = vlaneseq
        %v1538 = vshrl.u32 %v1537, 7
        %v1539 = vsub.s32 %v1255, %v1538
        %v1540 = vrot.slane %v957, %v1539
        %v1541 = vlaneseq
        %v1542 = vshrl.u32 %v1541, 7
        %v1543 = vsub.s32 %v1260, %v1542
        %v1544 = vrot.slane %v959, %v1543
        %v1545 = vsel %vm1265, %v1544, %v1540
        %v1546 = vsel %vm457, %v1275, %v1266
        %vm1547 = vcmask 1042434
        %v1548 = vsel %vm1547, %v1284, %v1546
        %vm1549 = vcmask 1043459
        %v1550 = vsel %vm1549, %v1293, %v1548
        %vm1551 = vcmask 1044484
        %v1552 = vsel %vm1551, %v1302, %v1550
        %vm1553 = vcmask 1045509
        %v1554 = vsel %vm1553, %v1311, %v1552
        %vm1555 = vcmask 1046534
        %v1556 = vsel %vm1555, %v1320, %v1554
        %vm1557 = vcmask 1047559
        %v1558 = vsel %vm1557, %v1329, %v1556
        %v1559 = vsel %vm457, %v1347, %v1338
        %v1560 = vsel %vm1547, %v1356, %v1559
        %v1561 = vsel %vm1549, %v1365, %v1560
        %v1562 = vsel %vm1551, %v1374, %v1561
        %v1563 = vsel %vm1553, %v1383, %v1562
        %v1564 = vsel %vm1555, %v1392, %v1563
        %v1565 = vsel %vm1557, %v1401, %v1564
        %v1566 = vsel %vm457, %v1419, %v1410
        %v1567 = vsel %vm1547, %v1428, %v1566
        %v1568 = vsel %vm1549, %v1437, %v1567
        %v1569 = vsel %vm1551, %v1446, %v1568
        %v1570 = vsel %vm1553, %v1455, %v1569
        %v1571 = vsel %vm1555, %v1464, %v1570
        %v1572 = vsel %vm1557, %v1473, %v1571
        %v1573 = vsel %vm457, %v1491, %v1482
        %v1574 = vsel %vm1547, %v1500, %v1573
        %v1575 = vsel %vm1549, %v1509, %v1574
        %v1576 = vsel %vm1551, %v1518, %v1575
        %v1577 = vsel %vm1553, %v1527, %v1576
        %v1578 = vsel %vm1555, %v1536, %v1577
        %v1579 = vsel %vm1557, %v1545, %v1578
        %vm1584 = vcmask 138248
        %1585 = vst.msk [vmem:[#allocation3 + $0x1] sm:$0xff] %vm1584, %v1558
        %1586 = vst.msk [vmem:[#allocation3 + $0x9] sm:$0xff] %vm1584, %v1565
        %1587 = vst.msk [vmem:[#allocation3 + $0x19] sm:$0xff] %vm1584, %v1572
        %1588 = vst.msk [vmem:[#allocation3 + $0x21] sm:$0xff] %vm1584, %v1579
        %v1653 = vlaneseq
        %v1654 = vshrl.u32 %v1653, 7
        %v1655 = vsub.s32 %v1255, %v1654
        %v1656 = vrot.slane %v1088, %v1655
        %v1657 = vlaneseq
        %v1658 = vshrl.u32 %v1657, 7
        %v1659 = vsub.s32 %v1260, %v1658
        %v1660 = vrot.slane %v1089, %v1659
        %v1661 = vsel %vm1265, %v1660, %v1656
        %v1662 = vlaneseq
        %v1663 = vshrl.u32 %v1662, 7
        %v1664 = vsub.s32 %v1255, %v1663
        %v1665 = vrot.slane %v1090, %v1664
        %v1666 = vlaneseq
        %v1667 = vshrl.u32 %v1666, 7
        %v1668 = vsub.s32 %v1260, %v1667
        %v1669 = vrot.slane %v1091, %v1668
        %v1670 = vsel %vm1265, %v1669, %v1665
        %v1671 = vlaneseq
        %v1672 = vshrl.u32 %v1671, 7
        %v1673 = vsub.s32 %v1255, %v1672
        %v1674 = vrot.slane %v1092, %v1673
        %v1675 = vlaneseq
        %v1676 = vshrl.u32 %v1675, 7
        %v1677 = vsub.s32 %v1260, %v1676
        %v1678 = vrot.slane %v1093, %v1677
        %v1679 = vsel %vm1265, %v1678, %v1674
        %v1680 = vlaneseq
        %v1681 = vshrl.u32 %v1680, 7
        %v1682 = vsub.s32 %v1255, %v1681
        %v1683 = vrot.slane %v1094, %v1682
        %v1684 = vlaneseq
        %v1685 = vshrl.u32 %v1684, 7
        %v1686 = vsub.s32 %v1260, %v1685
        %v1687 = vrot.slane %v1095, %v1686
        %v1688 = vsel %vm1265, %v1687, %v1683
        %v1689 = vlaneseq
        %v1690 = vshrl.u32 %v1689, 7
        %v1691 = vsub.s32 %v1255, %v1690
        %v1692 = vrot.slane %v1096, %v1691
        %v1693 = vlaneseq
        %v1694 = vshrl.u32 %v1693, 7
        %v1695 = vsub.s32 %v1260, %v1694
        %v1696 = vrot.slane %v1097, %v1695
        %v1697 = vsel %vm1265, %v1696, %v1692
        %v1698 = vlaneseq
        %v1699 = vshrl.u32 %v1698, 7
        %v1700 = vsub.s32 %v1255, %v1699
        %v1701 = vrot.slane %v1098, %v1700
        %v1702 = vlaneseq
        %v1703 = vshrl.u32 %v1702, 7
        %v1704 = vsub.s32 %v1260, %v1703
        %v1705 = vrot.slane %v1099, %v1704
        %v1706 = vsel %vm1265, %v1705, %v1701
        %v1707 = vlaneseq
        %v1708 = vshrl.u32 %v1707, 7
        %v1709 = vsub.s32 %v1255, %v1708
        %v1710 = vrot.slane %v1100, %v1709
        %v1711 = vlaneseq
        %v1712 = vshrl.u32 %v1711, 7
        %v1713 = vsub.s32 %v1260, %v1712
        %v1714 = vrot.slane %v1101, %v1713
        %v1715 = vsel %vm1265, %v1714, %v1710
        %v1716 = vlaneseq
        %v1717 = vshrl.u32 %v1716, 7
        %v1718 = vsub.s32 %v1255, %v1717
        %v1719 = vrot.slane %v1102, %v1718
        %v1720 = vlaneseq
        %v1721 = vshrl.u32 %v1720, 7
        %v1722 = vsub.s32 %v1260, %v1721
        %v1723 = vrot.slane %v1103, %v1722
        %v1724 = vsel %vm1265, %v1723, %v1719
        %v1725 = vlaneseq
        %v1726 = vshrl.u32 %v1725, 7
        %v1727 = vsub.s32 %v1255, %v1726
        %v1728 = vrot.slane %v1104, %v1727
        %v1729 = vlaneseq
        %v1730 = vshrl.u32 %v1729, 7
        %v1731 = vsub.s32 %v1260, %v1730
        %v1732 = vrot.slane %v1105, %v1731
        %v1733 = vsel %vm1265, %v1732, %v1728
        %v1734 = vlaneseq
        %v1735 = vshrl.u32 %v1734, 7
        %v1736 = vsub.s32 %v1255, %v1735
        %v1737 = vrot.slane %v1106, %v1736
        %v1738 = vlaneseq
        %v1739 = vshrl.u32 %v1738, 7
        %v1740 = vsub.s32 %v1260, %v1739
        %v1741 = vrot.slane %v1107, %v1740
        %v1742 = vsel %vm1265, %v1741, %v1737
        %v1743 = vlaneseq
        %v1744 = vshrl.u32 %v1743, 7
        %v1745 = vsub.s32 %v1255, %v1744
        %v1746 = vrot.slane %v1108, %v1745
        %v1747 = vlaneseq
        %v1748 = vshrl.u32 %v1747, 7
        %v1749 = vsub.s32 %v1260, %v1748
        %v1750 = vrot.slane %v1109, %v1749
        %v1751 = vsel %vm1265, %v1750, %v1746
        %v1752 = vlaneseq
        %v1753 = vshrl.u32 %v1752, 7
        %v1754 = vsub.s32 %v1255, %v1753
        %v1755 = vrot.slane %v1110, %v1754
        %v1756 = vlaneseq
        %v1757 = vshrl.u32 %v1756, 7
        %v1758 = vsub.s32 %v1260, %v1757
        %v1759 = vrot.slane %v1111, %v1758
        %v1760 = vsel %vm1265, %v1759, %v1755
        %v1761 = vlaneseq
        %v1762 = vshrl.u32 %v1761, 7
        %v1763 = vsub.s32 %v1255, %v1762
        %v1764 = vrot.slane %v1112, %v1763
        %v1765 = vlaneseq
        %v1766 = vshrl.u32 %v1765, 7
        %v1767 = vsub.s32 %v1260, %v1766
        %v1768 = vrot.slane %v1113, %v1767
        %v1769 = vsel %vm1265, %v1768, %v1764
        %v1770 = vlaneseq
        %v1771 = vshrl.u32 %v1770, 7
        %v1772 = vsub.s32 %v1255, %v1771
        %v1773 = vrot.slane %v1114, %v1772
        %v1774 = vlaneseq
        %v1775 = vshrl.u32 %v1774, 7
        %v1776 = vsub.s32 %v1260, %v1775
        %v1777 = vrot.slane %v1115, %v1776
        %v1778 = vsel %vm1265, %v1777, %v1773
        %v1779 = vlaneseq
        %v1780 = vshrl.u32 %v1779, 7
        %v1781 = vsub.s32 %v1255, %v1780
        %v1782 = vrot.slane %v1116, %v1781
        %v1783 = vlaneseq
        %v1784 = vshrl.u32 %v1783, 7
        %v1785 = vsub.s32 %v1260, %v1784
        %v1786 = vrot.slane %v1117, %v1785
        %v1787 = vsel %vm1265, %v1786, %v1782
        %v1788 = vlaneseq
        %v1789 = vshrl.u32 %v1788, 7
        %v1790 = vsub.s32 %v1255, %v1789
        %v1791 = vrot.slane %v1118, %v1790
        %v1792 = vlaneseq
        %v1793 = vshrl.u32 %v1792, 7
        %v1794 = vsub.s32 %v1260, %v1793
        %v1795 = vrot.slane %v1119, %v1794
        %v1796 = vsel %vm1265, %v1795, %v1791
        %v1797 = vlaneseq
        %v1798 = vshrl.u32 %v1797, 7
        %v1799 = vsub.s32 %v1255, %v1798
        %v1800 = vrot.slane %v1120, %v1799
        %v1801 = vlaneseq
        %v1802 = vshrl.u32 %v1801, 7
        %v1803 = vsub.s32 %v1260, %v1802
        %v1804 = vrot.slane %v1121, %v1803
        %v1805 = vsel %vm1265, %v1804, %v1800
        %v1806 = vlaneseq
        %v1807 = vshrl.u32 %v1806, 7
        %v1808 = vsub.s32 %v1255, %v1807
        %v1809 = vrot.slane %v1122, %v1808
        %v1810 = vlaneseq
        %v1811 = vshrl.u32 %v1810, 7
        %v1812 = vsub.s32 %v1260, %v1811
        %v1813 = vrot.slane %v1123, %v1812
        %v1814 = vsel %vm1265, %v1813, %v1809
        %v1815 = vlaneseq
        %v1816 = vshrl.u32 %v1815, 7
        %v1817 = vsub.s32 %v1255, %v1816
        %v1818 = vrot.slane %v1124, %v1817
        %v1819 = vlaneseq
        %v1820 = vshrl.u32 %v1819, 7
        %v1821 = vsub.s32 %v1260, %v1820
        %v1822 = vrot.slane %v1125, %v1821
        %v1823 = vsel %vm1265, %v1822, %v1818
        %v1824 = vlaneseq
        %v1825 = vshrl.u32 %v1824, 7
        %v1826 = vsub.s32 %v1255, %v1825
        %v1827 = vrot.slane %v1126, %v1826
        %v1828 = vlaneseq
        %v1829 = vshrl.u32 %v1828, 7
        %v1830 = vsub.s32 %v1260, %v1829
        %v1831 = vrot.slane %v1127, %v1830
        %v1832 = vsel %vm1265, %v1831, %v1827
        %v1833 = vlaneseq
        %v1834 = vshrl.u32 %v1833, 7
        %v1835 = vsub.s32 %v1255, %v1834
        %v1836 = vrot.slane %v1128, %v1835
        %v1837 = vlaneseq
        %v1838 = vshrl.u32 %v1837, 7
        %v1839 = vsub.s32 %v1260, %v1838
        %v1840 = vrot.slane %v1129, %v1839
        %v1841 = vsel %vm1265, %v1840, %v1836
        %v1842 = vlaneseq
        %v1843 = vshrl.u32 %v1842, 7
        %v1844 = vsub.s32 %v1255, %v1843
        %v1845 = vrot.slane %v1130, %v1844
        %v1846 = vlaneseq
        %v1847 = vshrl.u32 %v1846, 7
        %v1848 = vsub.s32 %v1260, %v1847
        %v1849 = vrot.slane %v1131, %v1848
        %v1850 = vsel %vm1265, %v1849, %v1845
        %v1851 = vlaneseq
        %v1852 = vshrl.u32 %v1851, 7
        %v1853 = vsub.s32 %v1255, %v1852
        %v1854 = vrot.slane %v1132, %v1853
        %v1855 = vlaneseq
        %v1856 = vshrl.u32 %v1855, 7
        %v1857 = vsub.s32 %v1260, %v1856
        %v1858 = vrot.slane %v1133, %v1857
        %v1859 = vsel %vm1265, %v1858, %v1854
        %v1860 = vlaneseq
        %v1861 = vshrl.u32 %v1860, 7
        %v1862 = vsub.s32 %v1255, %v1861
        %v1863 = vrot.slane %v1134, %v1862
        %v1864 = vlaneseq
        %v1865 = vshrl.u32 %v1864, 7
        %v1866 = vsub.s32 %v1260, %v1865
        %v1867 = vrot.slane %v1135, %v1866
        %v1868 = vsel %vm1265, %v1867, %v1863
        %v1869 = vlaneseq
        %v1870 = vshrl.u32 %v1869, 7
        %v1871 = vsub.s32 %v1255, %v1870
        %v1872 = vrot.slane %v1136, %v1871
        %v1873 = vlaneseq
        %v1874 = vshrl.u32 %v1873, 7
        %v1875 = vsub.s32 %v1260, %v1874
        %v1876 = vrot.slane %v1137, %v1875
        %v1877 = vsel %vm1265, %v1876, %v1872
        %v1878 = vlaneseq
        %v1879 = vshrl.u32 %v1878, 7
        %v1880 = vsub.s32 %v1255, %v1879
        %v1881 = vrot.slane %v1138, %v1880
        %v1882 = vlaneseq
        %v1883 = vshrl.u32 %v1882, 7
        %v1884 = vsub.s32 %v1260, %v1883
        %v1885 = vrot.slane %v1139, %v1884
        %v1886 = vsel %vm1265, %v1885, %v1881
        %v1887 = vlaneseq
        %v1888 = vshrl.u32 %v1887, 7
        %v1889 = vsub.s32 %v1255, %v1888
        %v1890 = vrot.slane %v1140, %v1889
        %v1891 = vlaneseq
        %v1892 = vshrl.u32 %v1891, 7
        %v1893 = vsub.s32 %v1260, %v1892
        %v1894 = vrot.slane %v1141, %v1893
        %v1895 = vsel %vm1265, %v1894, %v1890
        %v1896 = vlaneseq
        %v1897 = vshrl.u32 %v1896, 7
        %v1898 = vsub.s32 %v1255, %v1897
        %v1899 = vrot.slane %v1142, %v1898
        %v1900 = vlaneseq
        %v1901 = vshrl.u32 %v1900, 7
        %v1902 = vsub.s32 %v1260, %v1901
        %v1903 = vrot.slane %v1143, %v1902
        %v1904 = vsel %vm1265, %v1903, %v1899
        %v1905 = vlaneseq
        %v1906 = vshrl.u32 %v1905, 7
        %v1907 = vsub.s32 %v1255, %v1906
        %v1908 = vrot.slane %v1144, %v1907
        %v1909 = vlaneseq
        %v1910 = vshrl.u32 %v1909, 7
        %v1911 = vsub.s32 %v1260, %v1910
        %v1912 = vrot.slane %v1145, %v1911
        %v1913 = vsel %vm1265, %v1912, %v1908
        %v1914 = vlaneseq
        %v1915 = vshrl.u32 %v1914, 7
        %v1916 = vsub.s32 %v1255, %v1915
        %v1917 = vrot.slane %v1146, %v1916
        %v1918 = vlaneseq
        %v1919 = vshrl.u32 %v1918, 7
        %v1920 = vsub.s32 %v1260, %v1919
        %v1921 = vrot.slane %v1147, %v1920
        %v1922 = vsel %vm1265, %v1921, %v1917
        %v1923 = vlaneseq
        %v1924 = vshrl.u32 %v1923, 7
        %v1925 = vsub.s32 %v1255, %v1924
        %v1926 = vrot.slane %v1148, %v1925
        %v1927 = vlaneseq
        %v1928 = vshrl.u32 %v1927, 7
        %v1929 = vsub.s32 %v1260, %v1928
        %v1930 = vrot.slane %v1149, %v1929
        %v1931 = vsel %vm1265, %v1930, %v1926
        %v1932 = vlaneseq
        %v1933 = vshrl.u32 %v1932, 7
        %v1934 = vsub.s32 %v1255, %v1933
        %v1935 = vrot.slane %v1150, %v1934
        %v1936 = vlaneseq
        %v1937 = vshrl.u32 %v1936, 7
        %v1938 = vsub.s32 %v1260, %v1937
        %v1939 = vrot.slane %v1151, %v1938
        %v1940 = vsel %vm1265, %v1939, %v1935
        %v1941 = vsel %vm457, %v1670, %v1661
        %v1942 = vsel %vm1547, %v1679, %v1941
        %v1943 = vsel %vm1549, %v1688, %v1942
        %v1944 = vsel %vm1551, %v1697, %v1943
        %v1945 = vsel %vm1553, %v1706, %v1944
        %v1946 = vsel %vm1555, %v1715, %v1945
        %v1947 = vsel %vm1557, %v1724, %v1946
        %v1948 = vsel %vm457, %v1742, %v1733
        %v1949 = vsel %vm1547, %v1751, %v1948
        %v1950 = vsel %vm1549, %v1760, %v1949
        %v1951 = vsel %vm1551, %v1769, %v1950
        %v1952 = vsel %vm1553, %v1778, %v1951
        %v1953 = vsel %vm1555, %v1787, %v1952
        %v1954 = vsel %vm1557, %v1796, %v1953
        %v1955 = vsel %vm457, %v1814, %v1805
        %v1956 = vsel %vm1547, %v1823, %v1955
        %v1957 = vsel %vm1549, %v1832, %v1956
        %v1958 = vsel %vm1551, %v1841, %v1957
        %v1959 = vsel %vm1553, %v1850, %v1958
        %v1960 = vsel %vm1555, %v1859, %v1959
        %v1961 = vsel %vm1557, %v1868, %v1960
        %v1962 = vsel %vm457, %v1886, %v1877
        %v1963 = vsel %vm1547, %v1895, %v1962
        %v1964 = vsel %vm1549, %v1904, %v1963
        %v1965 = vsel %vm1551, %v1913, %v1964
        %v1966 = vsel %vm1553, %v1922, %v1965
        %v1967 = vsel %vm1555, %v1931, %v1966
        %v1968 = vsel %vm1557, %v1940, %v1967
        %s1973 = scalar_lea.vmem [#allocation3], 48
        %1974 = vst.msk [vmem:[%s1973 + $0x1] sm:$0xff] %vm1584, %v1947
        %1975 = vst.msk [vmem:[%s1973 + $0x9] sm:$0xff] %vm1584, %v1954
        %1976 = vst.msk [vmem:[%s1973 + $0x19] sm:$0xff] %vm1584, %v1961
        %1977 = vst.msk [vmem:[%s1973 + $0x21] sm:$0xff] %vm1584, %v1968
        %s1978 = sld [smem:[#allocation4]]
        %v1979 = vstv %s1978
        %v1980 = vadd.f32 %v1979, 0.0
        %s1981 = sld [smem:[#allocation9]]
        %v1982 = vld [vmem:[#allocation3] sm:$0xff]
        %v1983 = vld [vmem:[#allocation3 + $0x8] sm:$0xff]
        %v1984 = vld [vmem:[#allocation3 + $0x18] sm:$0xff]
        %v1985 = vld [vmem:[#allocation3 + $0x20] sm:$0xff]
        %v1986 = vstv %s1981
        %v1987 = vmul.f32 %v1986, %v1982
        %v1988 = vmul.f32 %v1986, %v1983
        %v1989 = vmul.f32 %v1986, %v1984
        %v1990 = vmul.f32 %v1986, %v1985
        %v1991 = vadd.f32 %v1980, %v1987
        %v1992 = vadd.f32 %v1980, %v1988
        %v1993 = vadd.f32 %v1980, %v1989
        %v1994 = vadd.f32 %v1980, %v1990
        %s1995 = sld [smem:[#allocation9 + $0x1]]
        %v1996 = vstv %s1995
        %v1997 = vmul.f32 %v1996, %v1982
        %v1998 = vmul.f32 %v1996, %v1983
        %v1999 = vmul.f32 %v1996, %v1984
        %v2000 = vmul.f32 %v1996, %v1985
        %2005 = vrot.lane.b32.xlu0 %v1997, 127
        %v2006 = vpop.permute.xlu0 %2005
        %2007 = vrot.lane.b32.xlu0 %v1998, 127
        %v2008 = vpop.permute.xlu0 %2007
        %2009 = vrot.lane.b32.xlu0 %v1999, 127
        %v2010 = vpop.permute.xlu0 %2009
        %2011 = vrot.lane.b32.xlu0 %v2000, 127
        %v2012 = vpop.permute.xlu0 %2011
        %v2017 = vadd.f32 %v1991, %v2006
        %v2018 = vadd.f32 %v1992, %v2008
        %v2019 = vadd.f32 %v1993, %v2010
        %v2020 = vadd.f32 %v1994, %v2012
        %s2021 = sld [smem:[#allocation9 + $0x2]]
        %v2022 = vstv %s2021
        %v2023 = vmul.f32 %v2022, %v1982
        %v2024 = vmul.f32 %v2022, %v1983
        %v2025 = vmul.f32 %v2022, %v1984
        %v2026 = vmul.f32 %v2022, %v1985
        %2031 = vrot.lane.b32.xlu0 %v2023, 126
        %v2032 = vpop.permute.xlu0 %2031
        %2033 = vrot.lane.b32.xlu0 %v2024, 126
        %v2034 = vpop.permute.xlu0 %2033
        %2035 = vrot.lane.b32.xlu0 %v2025, 126
        %v2036 = vpop.permute.xlu0 %2035
        %2037 = vrot.lane.b32.xlu0 %v2026, 126
        %v2038 = vpop.permute.xlu0 %2037
        %v2043 = vadd.f32 %v2017, %v2032
        %v2044 = vadd.f32 %v2018, %v2034
        %v2045 = vadd.f32 %v2019, %v2036
        %v2046 = vadd.f32 %v2020, %v2038
        %s2047 = sld [smem:[#allocation9 + $0x3]]
        %v2048 = vld [vmem:[#allocation3 + $0x1] sm:$0xff]
        %v2049 = vld [vmem:[#allocation3 + $0x9] sm:$0xff]
        %v2050 = vld [vmem:[#allocation3 + $0x19] sm:$0xff]
        %v2051 = vld [vmem:[#allocation3 + $0x21] sm:$0xff]
        %v2052 = vstv %s2047
        %v2053 = vmul.f32 %v2052, %v2048
        %v2054 = vmul.f32 %v2052, %v2049
        %v2055 = vmul.f32 %v2052, %v2050
        %v2056 = vmul.f32 %v2052, %v2051
        %v2057 = vadd.f32 %v2043, %v2053
        %v2058 = vadd.f32 %v2044, %v2054
        %v2059 = vadd.f32 %v2045, %v2055
        %v2060 = vadd.f32 %v2046, %v2056
        %s2061 = sld [smem:[#allocation9 + $0x4]]
        %v2062 = vstv %s2061
        %v2063 = vmul.f32 %v2062, %v2048
        %v2064 = vmul.f32 %v2062, %v2049
        %v2065 = vmul.f32 %v2062, %v2050
        %v2066 = vmul.f32 %v2062, %v2051
        %2071 = vrot.lane.b32.xlu0 %v2063, 127
        %v2072 = vpop.permute.xlu0 %2071
        %2073 = vrot.lane.b32.xlu0 %v2064, 127
        %v2074 = vpop.permute.xlu0 %2073
        %2075 = vrot.lane.b32.xlu0 %v2065, 127
        %v2076 = vpop.permute.xlu0 %2075
        %2077 = vrot.lane.b32.xlu0 %v2066, 127
        %v2078 = vpop.permute.xlu0 %2077
        %v2083 = vadd.f32 %v2057, %v2072
        %v2084 = vadd.f32 %v2058, %v2074
        %v2085 = vadd.f32 %v2059, %v2076
        %v2086 = vadd.f32 %v2060, %v2078
        %s2087 = sld [smem:[#allocation9 + $0x5]]
        %v2088 = vstv %s2087
        %v2089 = vmul.f32 %v2088, %v2048
        %v2090 = vmul.f32 %v2088, %v2049
        %v2091 = vmul.f32 %v2088, %v2050
        %v2092 = vmul.f32 %v2088, %v2051
        %2097 = vrot.lane.b32.xlu0 %v2089, 126
        %v2098 = vpop.permute.xlu0 %2097
        %2099 = vrot.lane.b32.xlu0 %v2090, 126
        %v2100 = vpop.permute.xlu0 %2099
        %2101 = vrot.lane.b32.xlu0 %v2091, 126
        %v2102 = vpop.permute.xlu0 %2101
        %2103 = vrot.lane.b32.xlu0 %v2092, 126
        %v2104 = vpop.permute.xlu0 %2103
        %v2109 = vadd.f32 %v2083, %v2098
        %v2110 = vadd.f32 %v2084, %v2100
        %v2111 = vadd.f32 %v2085, %v2102
        %v2112 = vadd.f32 %v2086, %v2104
        %s2113 = sld [smem:[#allocation9 + $0x6]]
        %v2114 = vld [vmem:[#allocation3 + $0x2] sm:$0xff]
        %v2115 = vld [vmem:[#allocation3 + $0xa] sm:$0xff]
        %v2116 = vld [vmem:[#allocation3 + $0x1a] sm:$0xff]
        %v2117 = vld [vmem:[#allocation3 + $0x22] sm:$0xff]
        %v2118 = vstv %s2113
        %v2119 = vmul.f32 %v2118, %v2114
        %v2120 = vmul.f32 %v2118, %v2115
        %v2121 = vmul.f32 %v2118, %v2116
        %v2122 = vmul.f32 %v2118, %v2117
        %v2123 = vadd.f32 %v2109, %v2119
        %v2124 = vadd.f32 %v2110, %v2120
        %v2125 = vadd.f32 %v2111, %v2121
        %v2126 = vadd.f32 %v2112, %v2122
        %s2127 = sld [smem:[#allocation9 + $0x7]]
        %v2128 = vstv %s2127
        %v2129 = vmul.f32 %v2128, %v2114
        %v2130 = vmul.f32 %v2128, %v2115
        %v2131 = vmul.f32 %v2128, %v2116
        %v2132 = vmul.f32 %v2128, %v2117
        %2137 = vrot.lane.b32.xlu0 %v2129, 127
        %v2138 = vpop.permute.xlu0 %2137
        %2139 = vrot.lane.b32.xlu0 %v2130, 127
        %v2140 = vpop.permute.xlu0 %2139
        %2141 = vrot.lane.b32.xlu0 %v2131, 127
        %v2142 = vpop.permute.xlu0 %2141
        %2143 = vrot.lane.b32.xlu0 %v2132, 127
        %v2144 = vpop.permute.xlu0 %2143
        %v2149 = vadd.f32 %v2123, %v2138
        %v2150 = vadd.f32 %v2124, %v2140
        %v2151 = vadd.f32 %v2125, %v2142
        %v2152 = vadd.f32 %v2126, %v2144
        %s2153 = sld [smem:[#allocation9 + $0x8]]
        %v2154 = vstv %s2153
        %v2155 = vmul.f32 %v2154, %v2114
        %v2156 = vmul.f32 %v2154, %v2115
        %v2157 = vmul.f32 %v2154, %v2116
        %v2158 = vmul.f32 %v2154, %v2117
        %2163 = vrot.lane.b32.xlu0 %v2155, 126
        %v2164 = vpop.permute.xlu0 %2163
        %2165 = vrot.lane.b32.xlu0 %v2156, 126
        %v2166 = vpop.permute.xlu0 %2165
        %2167 = vrot.lane.b32.xlu0 %v2157, 126
        %v2168 = vpop.permute.xlu0 %2167
        %2169 = vrot.lane.b32.xlu0 %v2158, 126
        %v2170 = vpop.permute.xlu0 %2169
        %v2175 = vadd.f32 %v2149, %v2164
        %v2176 = vadd.f32 %v2150, %v2166
        %v2177 = vadd.f32 %v2151, %v2168
        %v2178 = vadd.f32 %v2152, %v2170
        %s2179 = sld [smem:[#allocation9 + $0x9]]
        %v2180 = vld [vmem:[%s1973] sm:$0xff]
        %v2181 = vld [vmem:[%s1973 + $0x8] sm:$0xff]
        %v2182 = vld [vmem:[%s1973 + $0x18] sm:$0xff]
        %v2183 = vld [vmem:[%s1973 + $0x20] sm:$0xff]
        %v2184 = vstv %s2179
        %v2185 = vmul.f32 %v2184, %v2180
        %v2186 = vmul.f32 %v2184, %v2181
        %v2187 = vmul.f32 %v2184, %v2182
        %v2188 = vmul.f32 %v2184, %v2183
        %v2189 = vadd.f32 %v2175, %v2185
        %v2190 = vadd.f32 %v2176, %v2186
        %v2191 = vadd.f32 %v2177, %v2187
        %v2192 = vadd.f32 %v2178, %v2188
        %s2193 = sld [smem:[#allocation9 + $0xa]]
        %v2194 = vstv %s2193
        %v2195 = vmul.f32 %v2194, %v2180
        %v2196 = vmul.f32 %v2194, %v2181
        %v2197 = vmul.f32 %v2194, %v2182
        %v2198 = vmul.f32 %v2194, %v2183
        %2203 = vrot.lane.b32.xlu0 %v2195, 127
        %v2204 = vpop.permute.xlu0 %2203
        %2205 = vrot.lane.b32.xlu0 %v2196, 127
        %v2206 = vpop.permute.xlu0 %2205
        %2207 = vrot.lane.b32.xlu0 %v2197, 127
        %v2208 = vpop.permute.xlu0 %2207
        %2209 = vrot.lane.b32.xlu0 %v2198, 127
        %v2210 = vpop.permute.xlu0 %2209
        %v2215 = vadd.f32 %v2189, %v2204
        %v2216 = vadd.f32 %v2190, %v2206
        %v2217 = vadd.f32 %v2191, %v2208
        %v2218 = vadd.f32 %v2192, %v2210
        %s2219 = sld [smem:[#allocation9 + $0xb]]
        %v2220 = vstv %s2219
        %v2221 = vmul.f32 %v2220, %v2180
        %v2222 = vmul.f32 %v2220, %v2181
        %v2223 = vmul.f32 %v2220, %v2182
        %v2224 = vmul.f32 %v2220, %v2183
        %2229 = vrot.lane.b32.xlu0 %v2221, 126
        %v2230 = vpop.permute.xlu0 %2229
        %2231 = vrot.lane.b32.xlu0 %v2222, 126
        %v2232 = vpop.permute.xlu0 %2231
        %2233 = vrot.lane.b32.xlu0 %v2223, 126
        %v2234 = vpop.permute.xlu0 %2233
        %2235 = vrot.lane.b32.xlu0 %v2224, 126
        %v2236 = vpop.permute.xlu0 %2235
        %v2241 = vadd.f32 %v2215, %v2230
        %v2242 = vadd.f32 %v2216, %v2232
        %v2243 = vadd.f32 %v2217, %v2234
        %v2244 = vadd.f32 %v2218, %v2236
        %s2245 = sld [smem:[#allocation9 + $0xc]]
        %v2246 = vld [vmem:[%s1973 + $0x1] sm:$0xff]
        %v2247 = vld [vmem:[%s1973 + $0x9] sm:$0xff]
        %v2248 = vld [vmem:[%s1973 + $0x19] sm:$0xff]
        %v2249 = vld [vmem:[%s1973 + $0x21] sm:$0xff]
        %v2250 = vstv %s2245
        %v2251 = vmul.f32 %v2250, %v2246
        %v2252 = vmul.f32 %v2250, %v2247
        %v2253 = vmul.f32 %v2250, %v2248
        %v2254 = vmul.f32 %v2250, %v2249
        %v2255 = vadd.f32 %v2241, %v2251
        %v2256 = vadd.f32 %v2242, %v2252
        %v2257 = vadd.f32 %v2243, %v2253
        %v2258 = vadd.f32 %v2244, %v2254
        %s2259 = sld [smem:[#allocation9 + $0xd]]
        %v2260 = vstv %s2259
        %v2261 = vmul.f32 %v2260, %v2246
        %v2262 = vmul.f32 %v2260, %v2247
        %v2263 = vmul.f32 %v2260, %v2248
        %v2264 = vmul.f32 %v2260, %v2249
        %2269 = vrot.lane.b32.xlu0 %v2261, 127
        %v2270 = vpop.permute.xlu0 %2269
        %2271 = vrot.lane.b32.xlu0 %v2262, 127
        %v2272 = vpop.permute.xlu0 %2271
        %2273 = vrot.lane.b32.xlu0 %v2263, 127
        %v2274 = vpop.permute.xlu0 %2273
        %2275 = vrot.lane.b32.xlu0 %v2264, 127
        %v2276 = vpop.permute.xlu0 %2275
        %v2281 = vadd.f32 %v2255, %v2270
        %v2282 = vadd.f32 %v2256, %v2272
        %v2283 = vadd.f32 %v2257, %v2274
        %v2284 = vadd.f32 %v2258, %v2276
        %s2285 = sld [smem:[#allocation9 + $0xe]]
        %v2286 = vstv %s2285
        %v2287 = vmul.f32 %v2286, %v2246
        %v2288 = vmul.f32 %v2286, %v2247
        %v2289 = vmul.f32 %v2286, %v2248
        %v2290 = vmul.f32 %v2286, %v2249
        %2295 = vrot.lane.b32.xlu0 %v2287, 126
        %v2296 = vpop.permute.xlu0 %2295
        %2297 = vrot.lane.b32.xlu0 %v2288, 126
        %v2298 = vpop.permute.xlu0 %2297
        %2299 = vrot.lane.b32.xlu0 %v2289, 126
        %v2300 = vpop.permute.xlu0 %2299
        %2301 = vrot.lane.b32.xlu0 %v2290, 126
        %v2302 = vpop.permute.xlu0 %2301
        %v2307 = vadd.f32 %v2281, %v2296
        %v2308 = vadd.f32 %v2282, %v2298
        %v2309 = vadd.f32 %v2283, %v2300
        %v2310 = vadd.f32 %v2284, %v2302
        %s2311 = sld [smem:[#allocation9 + $0xf]]
        %v2312 = vld [vmem:[%s1973 + $0x2] sm:$0xff]
        %v2313 = vld [vmem:[%s1973 + $0xa] sm:$0xff]
        %v2314 = vld [vmem:[%s1973 + $0x1a] sm:$0xff]
        %v2315 = vld [vmem:[%s1973 + $0x22] sm:$0xff]
        %v2316 = vstv %s2311
        %v2317 = vmul.f32 %v2316, %v2312
        %v2318 = vmul.f32 %v2316, %v2313
        %v2319 = vmul.f32 %v2316, %v2314
        %v2320 = vmul.f32 %v2316, %v2315
        %v2321 = vadd.f32 %v2307, %v2317
        %v2322 = vadd.f32 %v2308, %v2318
        %v2323 = vadd.f32 %v2309, %v2319
        %v2324 = vadd.f32 %v2310, %v2320
        %s2325 = sld [smem:[#allocation9 + $0x10]]
        %v2326 = vstv %s2325
        %v2327 = vmul.f32 %v2326, %v2312
        %v2328 = vmul.f32 %v2326, %v2313
        %v2329 = vmul.f32 %v2326, %v2314
        %v2330 = vmul.f32 %v2326, %v2315
        %2335 = vrot.lane.b32.xlu0 %v2327, 127
        %v2336 = vpop.permute.xlu0 %2335
        %2337 = vrot.lane.b32.xlu0 %v2328, 127
        %v2338 = vpop.permute.xlu0 %2337
        %2339 = vrot.lane.b32.xlu0 %v2329, 127
        %v2340 = vpop.permute.xlu0 %2339
        %2341 = vrot.lane.b32.xlu0 %v2330, 127
        %v2342 = vpop.permute.xlu0 %2341
        %v2347 = vadd.f32 %v2321, %v2336
        %v2348 = vadd.f32 %v2322, %v2338
        %v2349 = vadd.f32 %v2323, %v2340
        %v2350 = vadd.f32 %v2324, %v2342
        %s2351 = sld [smem:[#allocation9 + $0x11]]
        %v2352 = vstv %s2351
        %v2353 = vmul.f32 %v2352, %v2312
        %v2354 = vmul.f32 %v2352, %v2313
        %v2355 = vmul.f32 %v2352, %v2314
        %v2356 = vmul.f32 %v2352, %v2315
        %2361 = vrot.lane.b32.xlu0 %v2353, 126
        %v2362 = vpop.permute.xlu0 %2361
        %2363 = vrot.lane.b32.xlu0 %v2354, 126
        %v2364 = vpop.permute.xlu0 %2363
        %2365 = vrot.lane.b32.xlu0 %v2355, 126
        %v2366 = vpop.permute.xlu0 %2365
        %2367 = vrot.lane.b32.xlu0 %v2356, 126
        %v2368 = vpop.permute.xlu0 %2367
        %v2373 = vadd.f32 %v2347, %v2362
        %v2374 = vadd.f32 %v2348, %v2364
        %v2375 = vadd.f32 %v2349, %v2366
        %v2376 = vadd.f32 %v2350, %v2368
        %v2377 = vsub.f32 0.0, %v2373
        %v2378 = vsub.f32 0.0, %v2374
        %v2379 = vsub.f32 0.0, %v2375
        %v2380 = vsub.f32 0.0, %v2376
        %v2381 = vmul.f32 %v2377, 1.442695
        %v2382 = vpow.pop %v2381
        %v2383 = vmul.f32 %v2378, 1.442695
        %v2384 = vpow.pop %v2383
        %v2385 = vmul.f32 %v2379, 1.442695
        %v2386 = vpow.pop %v2385
        %v2387 = vmul.f32 %v2380, 1.442695
        %v2388 = vpow.pop %v2387
        %v2389 = vadd.f32 %v2382, 1.0
        %v2390 = vadd.f32 %v2384, 1.0
        %v2391 = vadd.f32 %v2386, 1.0
        %v2392 = vadd.f32 %v2388, 1.0
        %v2393 = vrcp.pop %v2389
        %v2394 = vmul.f32 1.0, %v2393
        %v2395 = vrcp.pop %v2390
        %v2396 = vmul.f32 1.0, %v2395
        %v2397 = vrcp.pop %v2391
        %v2398 = vmul.f32 1.0, %v2397
        %v2399 = vrcp.pop %v2392
        %v2400 = vmul.f32 1.0, %v2399
        %v2401 = vlaneseq
        %v2402 = vshrl.u32 %v2401, 7
        %v2403 = vsub.s32 0, %v2402
        %v2404 = vrot.slane %v2394, %v2403
        %2406 = vbcast.lane.b32.xlu0 %v2404, 256
        %v2407 = vpop.permute.xlu0 %2406
        %s2409 = sor.u32 256, 8
        %2410 = vbcast.lane.b32.xlu0 %v2404, %s2409
        %v2411 = vpop.permute.xlu0 %2410
        %v2412 = vlaneseq
        %v2413 = vshrl.u32 %v2412, 7
        %v2414 = vsub.s32 1, %v2413
        %v2415 = vrot.slane %v2394, %v2414
        %2417 = vbcast.lane.b32.xlu0 %v2415, 256
        %v2418 = vpop.permute.xlu0 %2417
        %s2420 = sor.u32 256, 8
        %2421 = vbcast.lane.b32.xlu0 %v2415, %s2420
        %v2422 = vpop.permute.xlu0 %2421
        %v2423 = vlaneseq
        %v2424 = vshrl.u32 %v2423, 7
        %v2425 = vsub.s32 2, %v2424
        %v2426 = vrot.slane %v2394, %v2425
        %2428 = vbcast.lane.b32.xlu0 %v2426, 256
        %v2429 = vpop.permute.xlu0 %2428
        %s2431 = sor.u32 256, 8
        %2432 = vbcast.lane.b32.xlu0 %v2426, %s2431
        %v2433 = vpop.permute.xlu0 %2432
        %v2434 = vlaneseq
        %v2435 = vshrl.u32 %v2434, 7
        %v2436 = vsub.s32 3, %v2435
        %v2437 = vrot.slane %v2394, %v2436
        %2439 = vbcast.lane.b32.xlu0 %v2437, 256
        %v2440 = vpop.permute.xlu0 %2439
        %s2442 = sor.u32 256, 8
        %2443 = vbcast.lane.b32.xlu0 %v2437, %s2442
        %v2444 = vpop.permute.xlu0 %2443
        %v2445 = vlaneseq
        %v2446 = vshrl.u32 %v2445, 7
        %v2447 = vsub.s32 4, %v2446
        %v2448 = vrot.slane %v2394, %v2447
        %2450 = vbcast.lane.b32.xlu0 %v2448, 256
        %v2451 = vpop.permute.xlu0 %2450
        %s2453 = sor.u32 256, 8
        %2454 = vbcast.lane.b32.xlu0 %v2448, %s2453
        %v2455 = vpop.permute.xlu0 %2454
        %v2456 = vlaneseq
        %v2457 = vshrl.u32 %v2456, 7
        %v2458 = vsub.s32 5, %v2457
        %v2459 = vrot.slane %v2394, %v2458
        %2461 = vbcast.lane.b32.xlu0 %v2459, 256
        %v2462 = vpop.permute.xlu0 %2461
        %s2464 = sor.u32 256, 8
        %2465 = vbcast.lane.b32.xlu0 %v2459, %s2464
        %v2466 = vpop.permute.xlu0 %2465
        %v2467 = vlaneseq
        %v2468 = vshrl.u32 %v2467, 7
        %v2469 = vsub.s32 6, %v2468
        %v2470 = vrot.slane %v2394, %v2469
        %2472 = vbcast.lane.b32.xlu0 %v2470, 256
        %v2473 = vpop.permute.xlu0 %2472
        %s2475 = sor.u32 256, 8
        %2476 = vbcast.lane.b32.xlu0 %v2470, %s2475
        %v2477 = vpop.permute.xlu0 %2476
        %v2478 = vlaneseq
        %v2479 = vshrl.u32 %v2478, 7
        %v2480 = vsub.s32 7, %v2479
        %v2481 = vrot.slane %v2394, %v2480
        %2483 = vbcast.lane.b32.xlu0 %v2481, 256
        %v2484 = vpop.permute.xlu0 %2483
        %s2486 = sor.u32 256, 8
        %2487 = vbcast.lane.b32.xlu0 %v2481, %s2486
        %v2488 = vpop.permute.xlu0 %2487
        %v2489 = vlaneseq
        %v2490 = vshrl.u32 %v2489, 7
        %v2491 = vsub.s32 0, %v2490
        %v2492 = vrot.slane %v2396, %v2491
        %2494 = vbcast.lane.b32.xlu0 %v2492, 256
        %v2495 = vpop.permute.xlu0 %2494
        %s2497 = sor.u32 256, 8
        %2498 = vbcast.lane.b32.xlu0 %v2492, %s2497
        %v2499 = vpop.permute.xlu0 %2498
        %v2500 = vlaneseq
        %v2501 = vshrl.u32 %v2500, 7
        %v2502 = vsub.s32 1, %v2501
        %v2503 = vrot.slane %v2396, %v2502
        %2505 = vbcast.lane.b32.xlu0 %v2503, 256
        %v2506 = vpop.permute.xlu0 %2505
        %s2508 = sor.u32 256, 8
        %2509 = vbcast.lane.b32.xlu0 %v2503, %s2508
        %v2510 = vpop.permute.xlu0 %2509
        %v2511 = vlaneseq
        %v2512 = vshrl.u32 %v2511, 7
        %v2513 = vsub.s32 2, %v2512
        %v2514 = vrot.slane %v2396, %v2513
        %2516 = vbcast.lane.b32.xlu0 %v2514, 256
        %v2517 = vpop.permute.xlu0 %2516
        %s2519 = sor.u32 256, 8
        %2520 = vbcast.lane.b32.xlu0 %v2514, %s2519
        %v2521 = vpop.permute.xlu0 %2520
        %v2522 = vlaneseq
        %v2523 = vshrl.u32 %v2522, 7
        %v2524 = vsub.s32 3, %v2523
        %v2525 = vrot.slane %v2396, %v2524
        %2527 = vbcast.lane.b32.xlu0 %v2525, 256
        %v2528 = vpop.permute.xlu0 %2527
        %s2530 = sor.u32 256, 8
        %2531 = vbcast.lane.b32.xlu0 %v2525, %s2530
        %v2532 = vpop.permute.xlu0 %2531
        %v2533 = vlaneseq
        %v2534 = vshrl.u32 %v2533, 7
        %v2535 = vsub.s32 4, %v2534
        %v2536 = vrot.slane %v2396, %v2535
        %2538 = vbcast.lane.b32.xlu0 %v2536, 256
        %v2539 = vpop.permute.xlu0 %2538
        %s2541 = sor.u32 256, 8
        %2542 = vbcast.lane.b32.xlu0 %v2536, %s2541
        %v2543 = vpop.permute.xlu0 %2542
        %v2544 = vlaneseq
        %v2545 = vshrl.u32 %v2544, 7
        %v2546 = vsub.s32 5, %v2545
        %v2547 = vrot.slane %v2396, %v2546
        %2549 = vbcast.lane.b32.xlu0 %v2547, 256
        %v2550 = vpop.permute.xlu0 %2549
        %s2552 = sor.u32 256, 8
        %2553 = vbcast.lane.b32.xlu0 %v2547, %s2552
        %v2554 = vpop.permute.xlu0 %2553
        %v2555 = vlaneseq
        %v2556 = vshrl.u32 %v2555, 7
        %v2557 = vsub.s32 6, %v2556
        %v2558 = vrot.slane %v2396, %v2557
        %2560 = vbcast.lane.b32.xlu0 %v2558, 256
        %v2561 = vpop.permute.xlu0 %2560
        %s2563 = sor.u32 256, 8
        %2564 = vbcast.lane.b32.xlu0 %v2558, %s2563
        %v2565 = vpop.permute.xlu0 %2564
        %v2566 = vlaneseq
        %v2567 = vshrl.u32 %v2566, 7
        %v2568 = vsub.s32 7, %v2567
        %v2569 = vrot.slane %v2396, %v2568
        %2571 = vbcast.lane.b32.xlu0 %v2569, 256
        %v2572 = vpop.permute.xlu0 %2571
        %s2574 = sor.u32 256, 8
        %2575 = vbcast.lane.b32.xlu0 %v2569, %s2574
        %v2576 = vpop.permute.xlu0 %2575
        %v2577 = vlaneseq
        %v2578 = vshrl.u32 %v2577, 7
        %v2579 = vsub.s32 0, %v2578
        %v2580 = vrot.slane %v2398, %v2579
        %2582 = vbcast.lane.b32.xlu0 %v2580, 256
        %v2583 = vpop.permute.xlu0 %2582
        %s2585 = sor.u32 256, 8
        %2586 = vbcast.lane.b32.xlu0 %v2580, %s2585
        %v2587 = vpop.permute.xlu0 %2586
        %v2588 = vlaneseq
        %v2589 = vshrl.u32 %v2588, 7
        %v2590 = vsub.s32 1, %v2589
        %v2591 = vrot.slane %v2398, %v2590
        %2593 = vbcast.lane.b32.xlu0 %v2591, 256
        %v2594 = vpop.permute.xlu0 %2593
        %s2596 = sor.u32 256, 8
        %2597 = vbcast.lane.b32.xlu0 %v2591, %s2596
        %v2598 = vpop.permute.xlu0 %2597
        %v2599 = vlaneseq
        %v2600 = vshrl.u32 %v2599, 7
        %v2601 = vsub.s32 2, %v2600
        %v2602 = vrot.slane %v2398, %v2601
        %2604 = vbcast.lane.b32.xlu0 %v2602, 256
        %v2605 = vpop.permute.xlu0 %2604
        %s2607 = sor.u32 256, 8
        %2608 = vbcast.lane.b32.xlu0 %v2602, %s2607
        %v2609 = vpop.permute.xlu0 %2608
        %v2610 = vlaneseq
        %v2611 = vshrl.u32 %v2610, 7
        %v2612 = vsub.s32 3, %v2611
        %v2613 = vrot.slane %v2398, %v2612
        %2615 = vbcast.lane.b32.xlu0 %v2613, 256
        %v2616 = vpop.permute.xlu0 %2615
        %s2618 = sor.u32 256, 8
        %2619 = vbcast.lane.b32.xlu0 %v2613, %s2618
        %v2620 = vpop.permute.xlu0 %2619
        %v2621 = vlaneseq
        %v2622 = vshrl.u32 %v2621, 7
        %v2623 = vsub.s32 4, %v2622
        %v2624 = vrot.slane %v2398, %v2623
        %2626 = vbcast.lane.b32.xlu0 %v2624, 256
        %v2627 = vpop.permute.xlu0 %2626
        %s2629 = sor.u32 256, 8
        %2630 = vbcast.lane.b32.xlu0 %v2624, %s2629
        %v2631 = vpop.permute.xlu0 %2630
        %v2632 = vlaneseq
        %v2633 = vshrl.u32 %v2632, 7
        %v2634 = vsub.s32 5, %v2633
        %v2635 = vrot.slane %v2398, %v2634
        %2637 = vbcast.lane.b32.xlu0 %v2635, 256
        %v2638 = vpop.permute.xlu0 %2637
        %s2640 = sor.u32 256, 8
        %2641 = vbcast.lane.b32.xlu0 %v2635, %s2640
        %v2642 = vpop.permute.xlu0 %2641
        %v2643 = vlaneseq
        %v2644 = vshrl.u32 %v2643, 7
        %v2645 = vsub.s32 6, %v2644
        %v2646 = vrot.slane %v2398, %v2645
        %2648 = vbcast.lane.b32.xlu0 %v2646, 256
        %v2649 = vpop.permute.xlu0 %2648
        %s2651 = sor.u32 256, 8
        %2652 = vbcast.lane.b32.xlu0 %v2646, %s2651
        %v2653 = vpop.permute.xlu0 %2652
        %v2654 = vlaneseq
        %v2655 = vshrl.u32 %v2654, 7
        %v2656 = vsub.s32 7, %v2655
        %v2657 = vrot.slane %v2398, %v2656
        %2659 = vbcast.lane.b32.xlu0 %v2657, 256
        %v2660 = vpop.permute.xlu0 %2659
        %s2662 = sor.u32 256, 8
        %2663 = vbcast.lane.b32.xlu0 %v2657, %s2662
        %v2664 = vpop.permute.xlu0 %2663
        %v2665 = vlaneseq
        %v2666 = vshrl.u32 %v2665, 7
        %v2667 = vsub.s32 0, %v2666
        %v2668 = vrot.slane %v2400, %v2667
        %2670 = vbcast.lane.b32.xlu0 %v2668, 256
        %v2671 = vpop.permute.xlu0 %2670
        %s2673 = sor.u32 256, 8
        %2674 = vbcast.lane.b32.xlu0 %v2668, %s2673
        %v2675 = vpop.permute.xlu0 %2674
        %v2676 = vlaneseq
        %v2677 = vshrl.u32 %v2676, 7
        %v2678 = vsub.s32 1, %v2677
        %v2679 = vrot.slane %v2400, %v2678
        %2681 = vbcast.lane.b32.xlu0 %v2679, 256
        %v2682 = vpop.permute.xlu0 %2681
        %s2684 = sor.u32 256, 8
        %2685 = vbcast.lane.b32.xlu0 %v2679, %s2684
        %v2686 = vpop.permute.xlu0 %2685
        %v2687 = vlaneseq
        %v2688 = vshrl.u32 %v2687, 7
        %v2689 = vsub.s32 2, %v2688
        %v2690 = vrot.slane %v2400, %v2689
        %2692 = vbcast.lane.b32.xlu0 %v2690, 256
        %v2693 = vpop.permute.xlu0 %2692
        %s2695 = sor.u32 256, 8
        %2696 = vbcast.lane.b32.xlu0 %v2690, %s2695
        %v2697 = vpop.permute.xlu0 %2696
        %v2698 = vlaneseq
        %v2699 = vshrl.u32 %v2698, 7
        %v2700 = vsub.s32 3, %v2699
        %v2701 = vrot.slane %v2400, %v2700
        %2703 = vbcast.lane.b32.xlu0 %v2701, 256
        %v2704 = vpop.permute.xlu0 %2703
        %s2706 = sor.u32 256, 8
        %2707 = vbcast.lane.b32.xlu0 %v2701, %s2706
        %v2708 = vpop.permute.xlu0 %2707
        %v2709 = vlaneseq
        %v2710 = vshrl.u32 %v2709, 7
        %v2711 = vsub.s32 4, %v2710
        %v2712 = vrot.slane %v2400, %v2711
        %2714 = vbcast.lane.b32.xlu0 %v2712, 256
        %v2715 = vpop.permute.xlu0 %2714
        %s2717 = sor.u32 256, 8
        %2718 = vbcast.lane.b32.xlu0 %v2712, %s2717
        %v2719 = vpop.permute.xlu0 %2718
        %v2720 = vlaneseq
        %v2721 = vshrl.u32 %v2720, 7
        %v2722 = vsub.s32 5, %v2721
        %v2723 = vrot.slane %v2400, %v2722
        %2725 = vbcast.lane.b32.xlu0 %v2723, 256
        %v2726 = vpop.permute.xlu0 %2725
        %s2728 = sor.u32 256, 8
        %2729 = vbcast.lane.b32.xlu0 %v2723, %s2728
        %v2730 = vpop.permute.xlu0 %2729
        %v2731 = vlaneseq
        %v2732 = vshrl.u32 %v2731, 7
        %v2733 = vsub.s32 6, %v2732
        %v2734 = vrot.slane %v2400, %v2733
        %2736 = vbcast.lane.b32.xlu0 %v2734, 256
        %v2737 = vpop.permute.xlu0 %2736
        %s2739 = sor.u32 256, 8
        %2740 = vbcast.lane.b32.xlu0 %v2734, %s2739
        %v2741 = vpop.permute.xlu0 %2740
        %v2742 = vlaneseq
        %v2743 = vshrl.u32 %v2742, 7
        %v2744 = vsub.s32 7, %v2743
        %v2745 = vrot.slane %v2400, %v2744
        %2747 = vbcast.lane.b32.xlu0 %v2745, 256
        %v2748 = vpop.permute.xlu0 %2747
        %s2750 = sor.u32 256, 8
        %2751 = vbcast.lane.b32.xlu0 %v2745, %s2750
        %v2752 = vpop.permute.xlu0 %2751
        %v2753 = vmul.f32 %v768, %v2407
        %v2754 = vmul.f32 %v769, %v2411
        %v2755 = vmul.f32 %v770, %v2418
        %v2756 = vmul.f32 %v771, %v2422
        %v2757 = vmul.f32 %v772, %v2429
        %v2758 = vmul.f32 %v773, %v2433
        %v2759 = vmul.f32 %v774, %v2440
        %v2760 = vmul.f32 %v775, %v2444
        %v2761 = vmul.f32 %v776, %v2451
        %v2762 = vmul.f32 %v777, %v2455
        %v2763 = vmul.f32 %v778, %v2462
        %v2764 = vmul.f32 %v779, %v2466
        %v2765 = vmul.f32 %v780, %v2473
        %v2766 = vmul.f32 %v781, %v2477
        %v2767 = vmul.f32 %v782, %v2484
        %v2768 = vmul.f32 %v783, %v2488
        %v2769 = vmul.f32 %v784, %v2495
        %v2770 = vmul.f32 %v785, %v2499
        %v2771 = vmul.f32 %v786, %v2506
        %v2772 = vmul.f32 %v787, %v2510
        %v2773 = vmul.f32 %v788, %v2517
        %v2774 = vmul.f32 %v789, %v2521
        %v2775 = vmul.f32 %v790, %v2528
        %v2776 = vmul.f32 %v791, %v2532
        %v2777 = vmul.f32 %v792, %v2539
        %v2778 = vmul.f32 %v793, %v2543
        %v2779 = vmul.f32 %v794, %v2550
        %v2780 = vmul.f32 %v795, %v2554
        %v2781 = vmul.f32 %v796, %v2561
        %v2782 = vmul.f32 %v797, %v2565
        %v2783 = vmul.f32 %v798, %v2572
        %v2784 = vmul.f32 %v799, %v2576
        %v2785 = vmul.f32 %v800, %v2583
        %v2786 = vmul.f32 %v801, %v2587
        %v2787 = vmul.f32 %v802, %v2594
        %v2788 = vmul.f32 %v803, %v2598
        %v2789 = vmul.f32 %v804, %v2605
        %v2790 = vmul.f32 %v805, %v2609
        %v2791 = vmul.f32 %v806, %v2616
        %v2792 = vmul.f32 %v807, %v2620
        %v2793 = vmul.f32 %v808, %v2627
        %v2794 = vmul.f32 %v809, %v2631
        %v2795 = vmul.f32 %v810, %v2638
        %v2796 = vmul.f32 %v811, %v2642
        %v2797 = vmul.f32 %v812, %v2649
        %v2798 = vmul.f32 %v813, %v2653
        %v2799 = vmul.f32 %v814, %v2660
        %v2800 = vmul.f32 %v815, %v2664
        %v2801 = vmul.f32 %v816, %v2671
        %v2802 = vmul.f32 %v817, %v2675
        %v2803 = vmul.f32 %v818, %v2682
        %v2804 = vmul.f32 %v819, %v2686
        %v2805 = vmul.f32 %v820, %v2693
        %v2806 = vmul.f32 %v821, %v2697
        %v2807 = vmul.f32 %v822, %v2704
        %v2808 = vmul.f32 %v823, %v2708
        %v2809 = vmul.f32 %v824, %v2715
        %v2810 = vmul.f32 %v825, %v2719
        %v2811 = vmul.f32 %v826, %v2726
        %v2812 = vmul.f32 %v827, %v2730
        %v2813 = vmul.f32 %v828, %v2737
        %v2814 = vmul.f32 %v829, %v2741
        %v2815 = vmul.f32 %v830, %v2748
        %v2816 = vmul.f32 %v831, %v2752
        %2817 = vst [vmem:[%s312] sm:$0xff] %v2753
        %2818 = vst [vmem:[%s312 + $0x8] sm:$0xff] %v2754
        %2819 = vst [vmem:[%s312 + $0x10] sm:$0xff] %v2755
        %2820 = vst [vmem:[%s312 + $0x18] sm:$0xff] %v2756
        %2821 = vst [vmem:[%s312 + $0x20] sm:$0xff] %v2757
        %2822 = vst [vmem:[%s312 + $0x28] sm:$0xff] %v2758
        %2823 = vst [vmem:[%s312 + $0x30] sm:$0xff] %v2759
        %2824 = vst [vmem:[%s312 + $0x38] sm:$0xff] %v2760
        %2825 = vst [vmem:[%s312 + $0x40] sm:$0xff] %v2761
        %2826 = vst [vmem:[%s312 + $0x48] sm:$0xff] %v2762
        %2827 = vst [vmem:[%s312 + $0x50] sm:$0xff] %v2763
        %2828 = vst [vmem:[%s312 + $0x58] sm:$0xff] %v2764
        %2829 = vst [vmem:[%s312 + $0x60] sm:$0xff] %v2765
        %2830 = vst [vmem:[%s312 + $0x68] sm:$0xff] %v2766
        %2831 = vst [vmem:[%s312 + $0x70] sm:$0xff] %v2767
        %2832 = vst [vmem:[%s312 + $0x78] sm:$0xff] %v2768
        %2833 = vst [vmem:[%s312 + $0x80] sm:$0xff] %v2769
        %2834 = vst [vmem:[%s312 + $0x88] sm:$0xff] %v2770
        %2835 = vst [vmem:[%s312 + $0x90] sm:$0xff] %v2771
        %2836 = vst [vmem:[%s312 + $0x98] sm:$0xff] %v2772
        %2837 = vst [vmem:[%s312 + $0xa0] sm:$0xff] %v2773
        %2838 = vst [vmem:[%s312 + $0xa8] sm:$0xff] %v2774
        %2839 = vst [vmem:[%s312 + $0xb0] sm:$0xff] %v2775
        %2840 = vst [vmem:[%s312 + $0xb8] sm:$0xff] %v2776
        %2841 = vst [vmem:[%s312 + $0xc0] sm:$0xff] %v2777
        %2842 = vst [vmem:[%s312 + $0xc8] sm:$0xff] %v2778
        %2843 = vst [vmem:[%s312 + $0xd0] sm:$0xff] %v2779
        %2844 = vst [vmem:[%s312 + $0xd8] sm:$0xff] %v2780
        %2845 = vst [vmem:[%s312 + $0xe0] sm:$0xff] %v2781
        %2846 = vst [vmem:[%s312 + $0xe8] sm:$0xff] %v2782
        %2847 = vst [vmem:[%s312 + $0xf0] sm:$0xff] %v2783
        %2848 = vst [vmem:[%s312 + $0xf8] sm:$0xff] %v2784
        %2849 = vst [vmem:[%s312 + $0x100] sm:$0xff] %v2785
        %2850 = vst [vmem:[%s312 + $0x108] sm:$0xff] %v2786
        %2851 = vst [vmem:[%s312 + $0x110] sm:$0xff] %v2787
        %2852 = vst [vmem:[%s312 + $0x118] sm:$0xff] %v2788
        %2853 = vst [vmem:[%s312 + $0x120] sm:$0xff] %v2789
        %2854 = vst [vmem:[%s312 + $0x128] sm:$0xff] %v2790
        %2855 = vst [vmem:[%s312 + $0x130] sm:$0xff] %v2791
        %2856 = vst [vmem:[%s312 + $0x138] sm:$0xff] %v2792
        %2857 = vst [vmem:[%s312 + $0x140] sm:$0xff] %v2793
        %2858 = vst [vmem:[%s312 + $0x148] sm:$0xff] %v2794
        %2859 = vst [vmem:[%s312 + $0x150] sm:$0xff] %v2795
        %2860 = vst [vmem:[%s312 + $0x158] sm:$0xff] %v2796
        %2861 = vst [vmem:[%s312 + $0x160] sm:$0xff] %v2797
        %2862 = vst [vmem:[%s312 + $0x168] sm:$0xff] %v2798
        %2863 = vst [vmem:[%s312 + $0x170] sm:$0xff] %v2799
        %2864 = vst [vmem:[%s312 + $0x178] sm:$0xff] %v2800
        %2865 = vst [vmem:[%s312 + $0x180] sm:$0xff] %v2801
        %2866 = vst [vmem:[%s312 + $0x188] sm:$0xff] %v2802
        %2867 = vst [vmem:[%s312 + $0x190] sm:$0xff] %v2803
        %2868 = vst [vmem:[%s312 + $0x198] sm:$0xff] %v2804
        %2869 = vst [vmem:[%s312 + $0x1a0] sm:$0xff] %v2805
        %2870 = vst [vmem:[%s312 + $0x1a8] sm:$0xff] %v2806
        %2871 = vst [vmem:[%s312 + $0x1b0] sm:$0xff] %v2807
        %2872 = vst [vmem:[%s312 + $0x1b8] sm:$0xff] %v2808
        %2873 = vst [vmem:[%s312 + $0x1c0] sm:$0xff] %v2809
        %2874 = vst [vmem:[%s312 + $0x1c8] sm:$0xff] %v2810
        %2875 = vst [vmem:[%s312 + $0x1d0] sm:$0xff] %v2811
        %2876 = vst [vmem:[%s312 + $0x1d8] sm:$0xff] %v2812
        %2877 = vst [vmem:[%s312 + $0x1e0] sm:$0xff] %v2813
        %2878 = vst [vmem:[%s312 + $0x1e8] sm:$0xff] %v2814
        %2879 = vst [vmem:[%s312 + $0x1f0] sm:$0xff] %v2815
        %2880 = vst [vmem:[%s312 + $0x1f8] sm:$0xff] %v2816
        %s2881 = sand.u32 %s186, 1
        %s2882 = scalar_lea.sflag [#allocation7], %s2881
        %s2883 = sand.u32 %s186, 1
        %s2884 = smul.addr %s2883, 512
        %s2885 = scalar_lea.vmem [#allocation10], %s2884
        // Predicated region
        $region57: #{cbam_forward.1} parent=47 // pred_check
          %p2886 = pneg %p196
        $region58: #{cbam_forward.1} parent=47 // pred_check_branch
          %2888 = sbr.rel (%p2886) target = $region60
        $region59: #{cbam_forward.1} parent=47 // pred_region
          %s2889 = smul.u32 2, %s26
          %s2891 = ssub.s32 8192, 8192
          %2892 = vsyncadd %s2882, %s2891
          %s2893 = smul.addr %s2889, 32
          %s2894 = smul.addr %s2893, 128
          %s2895 = scalar_lea.hbm %s7, %s2894
          %s2896 = sshll.u32 %s2885, 4
          %s2897 = int_to_ptr.vmem [resolvable:$true] %s2896
          %2902 = dma.vmem_to_hbm [thread:$0]  %s2897, 8192, %s2895, %s2882, 128, 128, 8
        $region60: #{cbam_forward.1} parent=47 // pred_fallthru
          _
      $region48: #{cbam_forward.1} parent=5 // pred_fallthru
        _
      %p2903 = scmp.le.s32.totalorder 2, %s21
      // Predicated region
      $region61: #{cbam_forward.1} parent=5 // pred_check
        %p2904 = pneg %p2903
      $region62: #{cbam_forward.1} parent=5 // pred_check_branch
        %2906 = sbr.rel (%p2904) target = $region64
      $region63: #{cbam_forward.1} parent=5 // pred_region
        %s2907 = ssub.s32 %s21, 2
        // Predicated region
        $region65: #{cbam_forward.1} parent=63 // pred_check
          %p2908 = pneg %p202
        $region66: #{cbam_forward.1} parent=63 // pred_check_branch
          %2910 = sbr.rel (%p2908) target = $region68
        $region67: #{cbam_forward.1} parent=63 // pred_region
          %s2911 = sand.u32 %s187, 1
          %s2912 = scalar_lea.sflag [#allocation7], %s2911
          %s2913 = sand.u32 %s187, 1
          %s2914 = smul.addr %s2913, 512
          %s2915 = scalar_lea.vmem [#allocation10], %s2914
          %2916 = dma.done %s2912, 8192
        $region68: #{cbam_forward.1} parent=63 // pred_fallthru
          _
      $region64: #{cbam_forward.1} parent=5 // pred_fallthru
        _
    $region6: #{cbam_forward.1} parent=1 // loop_footer
      %s25 = sadd.s32 1, %s21
    $region7: #{cbam_forward.1} parent=1 // loop_footer_branch
      %20 = sbr.rel target = $region3
    $region8: #{cbam_forward.1} parent=1 // loop_exit
      _
    %2917 = vsyncpa [#allocation6], 1
    %s2918 = scalar_lea.sflag [#allocation6], 1
    %2919 = vsyncpa %s2918, 1
    %2920 = vsyncpa [#allocation7], 1
    %s2921 = scalar_lea.sflag [#allocation7], 1
    %2922 = vsyncpa %s2921, 1
    %2923 = vsyncpa [#allocation8], 1
    %s2924 = scalar_lea.sflag [#allocation8], 1
    %2925 = vsyncpa %s2924, 1

</llo_original>
